<compile_context>
chip_gen: v7x
topology: tpu7x:2x2x1
jax: 0.10.0
libtpu: 0.0.40
codegen_flags: <defaults>
</compile_context>

<pallas_src>
import functools

import jax
import jax.numpy as jnp
from jax import lax
from jax.experimental import pallas as pl
from jax.experimental.pallas import tpu as pltpu

# ----- config (stand-in for the repo's `config` module) -----
EMBED_SIZE = 32
HIDDEN_SIZE = 32
NUM_LAYERS = 2         # kernel is specialized for the config's 2-layer LSTM
DROPOUT = 0.5          # unused at inference (eval mode -> identity)
VOCAB_SIZE = 50
VOCAB_PAD = 128        # lane-dense fc output width (multiple of 128)


def _lstm_cell(gates, c_prev, hidden):
    """PyTorch LSTM cell update from pre-activation gates (i,f,g,o order)."""
    H = hidden
    sg = jax.nn.sigmoid(gates)     # full-vreg EUP pass, then slice gate blocks
    tg = jnp.tanh(gates)
    i_g = sg[:, 0 * H:1 * H]
    f_g = sg[:, 1 * H:2 * H]
    g_g = tg[:, 2 * H:3 * H]
    o_g = sg[:, 3 * H:4 * H]
    c_new = f_g * c_prev + i_g * g_g
    h_new = o_g * jnp.tanh(c_new)
    return h_new, c_new


# ---------------------------------------------------------------------------
# One fused kernel, no grid: gather/concat + 2 interleaved LSTM layers + fc.
# ref order: captions(SMEM), feats, embed3d, w_ih0, b0, w_big, b1, fc_w, fc_b,
#            out, x_scr, proj_scr, seq_scr
# ---------------------------------------------------------------------------
def _decoder_kernel(cap_ref, feat_ref, emb_ref, w_ih0_ref, b0_ref,
                    w_big_ref, b1_ref, fc_w_ref, fc_b_ref,
                    out_ref,
                    x_scr, proj_scr, seq_scr,
                    *, seq_t, batch_b, hidden):
    T, B, H = seq_t, batch_b, hidden

    # --- fused embedding gather + feature concat: build layer-0 input in VMEM.
    # Row layout matches x.reshape(T*B, E): row n*B     = features[n]
    #                                       row n*B + s = embed[captions[n, s-1]]
    for n in range(T):
        r = n * B
        x_scr[r:r + 1, :] = feat_ref[n:n + 1, :]
        for s in range(1, B):
            idx = cap_ref[n, s - 1]                    # SMEM scalar read
            x_scr[r + s:r + s + 1, :] = emb_ref[idx]   # dynamic (1, E) row gather

    # --- hoisted layer-0 input projection + bias: one matmul for all steps.
    proj_scr[...] = (
        jnp.dot(x_scr[...], w_ih0_ref[...], preferred_element_type=jnp.float32)
        + b0_ref[...])

    w_big = w_big_ref[...]     # (2H, 8H) = [[w_hh0 | w_ih1], [0 | w_hh1]]
    b1 = b1_ref[...]           # (1, 4H)

    zeros = jnp.zeros((B, H), jnp.float32)

    # prologue: layer-0 step 0 (h0_prev = 0 => recurrent term vanishes).
    h0, c0 = _lstm_cell(proj_scr[pl.ds(0, B), :], zeros, H)

    # skewed loop: iteration j computes layer-0 step j+1 AND layer-1 step j,
    # both fed by one fused (B,2H)x(2H,8H) matmul on [h0_j | h1_{j-1}].
    def body(j, carry):
        h0, c0, h1, c1 = carry
        big = jnp.dot(jnp.concatenate([h0, h1], axis=1), w_big,
                      preferred_element_type=jnp.float32)        # (B, 8H)
        # layer 0, step j+1
        r1 = pl.multiple_of((j + 1) * B, B)
        g0 = proj_scr[pl.ds(r1, B), :] + big[:, :4 * H]
        h0n, c0n = _lstm_cell(g0, c0, H)
        # layer 1, step j (consumes the carried h0_j)
        g1 = big[:, 4 * H:] + b1
        h1n, c1n = _lstm_cell(g1, c1, H)
        r0 = pl.multiple_of(j * B, B)
        seq_scr[pl.ds(r0, B), :] = h1n
        return h0n, c0n, h1n, c1n

    unroll = max(1, min(8, T - 1))          # capped unroll: LLO lookahead, no IMEM blowup
    h0, c0, h1, c1 = lax.fori_loop(0, T - 1, body, (h0, c0, zeros, zeros),
                                   unroll=unroll)

    # epilogue: layer-1 step T-1 (consumes the final h0_{T-1}).
    big = jnp.dot(jnp.concatenate([h0, h1], axis=1), w_big,
                  preferred_element_type=jnp.float32)
    h1, c1 = _lstm_cell(big[:, 4 * H:] + b1, c1, H)
    r_last = (T - 1) * B
    seq_scr[r_last:r_last + B, :] = h1

    # fc head: (T*B, H) @ (H, VOCAB_PAD) + bias -> single lane-dense HBM store.
    out_ref[...] = (
        jnp.dot(seq_scr[...], fc_w_ref[...], preferred_element_type=jnp.float32)
        + fc_b_ref[...])


def _decoder_pallas_call(captions, features, prep, *, T, B):
    E, H = EMBED_SIZE, HIDDEN_SIZE
    emb3d = prep["embed3d"]

    inputs = [captions, features, emb3d,
              prep["w_ih0_t"], prep["b0"], prep["w_big"], prep["b1"],
              prep["fc_w_pad"], prep["fc_b_pad"]]

    in_specs = [
        pl.BlockSpec(memory_space=pltpu.MemorySpace.SMEM),        # captions (scalars)
        pl.BlockSpec(features.shape, lambda: (0, 0)),
        pl.BlockSpec(emb3d.shape, lambda: (0, 0, 0)),
        pl.BlockSpec(prep["w_ih0_t"].shape, lambda: (0, 0)),
        pl.BlockSpec(prep["b0"].shape, lambda: (0, 0)),
        pl.BlockSpec(prep["w_big"].shape, lambda: (0, 0)),
        pl.BlockSpec(prep["b1"].shape, lambda: (0, 0)),
        pl.BlockSpec(prep["fc_w_pad"].shape, lambda: (0, 0)),
        pl.BlockSpec(prep["fc_b_pad"].shape, lambda: (0, 0)),
    ]

    kernel = functools.partial(_decoder_kernel, seq_t=T, batch_b=B, hidden=H)

    flops = (2 * T * B * E * 4 * H                 # hoisted input projection
             + 2 * T * B * (2 * H) * (8 * H)       # fused recurrent matmuls
             + 2 * T * B * H * VOCAB_PAD)          # fc head
    transcendentals = T * B * 2 * 9 * H            # sigmoid/tanh, both layers
    bytes_accessed = 4 * (T * B * VOCAB_PAD + features.size + emb3d.size
                          + prep["w_ih0_t"].size + prep["b0"].size
                          + prep["w_big"].size + prep["b1"].size
                          + prep["fc_w_pad"].size + prep["fc_b_pad"].size
                          + captions.size)

    return pl.pallas_call(
        kernel,
        out_shape=jax.ShapeDtypeStruct((T * B, VOCAB_PAD), jnp.float32),
        in_specs=in_specs,
        out_specs=pl.BlockSpec((T * B, VOCAB_PAD), lambda: (0, 0)),
        scratch_shapes=[
            pltpu.VMEM((T * B, E), jnp.float32),        # gathered layer-0 input
            pltpu.VMEM((T * B, 4 * H), jnp.float32),    # hoisted gate projections
            pltpu.VMEM((T * B, H), jnp.float32),        # layer-1 hidden sequence
        ],
        cost_estimate=pl.CostEstimate(flops=flops,
                                      transcendentals=transcendentals,
                                      bytes_accessed=bytes_accessed),
    )(*inputs)


# ---------------------------------------------------------------------------
# One-time parameter prep (kept OUT of the jitted per-call path).
# ---------------------------------------------------------------------------
def prepare_decoder_params(params):
    assert NUM_LAYERS == 2 and len(params["lstm"]) == 2, "kernel specialized for 2 layers"
    H = HIDDEN_SIZE
    l0, l1 = params["lstm"]
    # Block weight for the fused per-step recurrent matmul:
    #   [h0 | h1] @ W_big = [ h0@w_hh0 | h0@w_ih1 + h1@w_hh1 ]
    w_big = jnp.zeros((2 * H, 8 * H), jnp.float32)
    w_big = w_big.at[:H, :4 * H].set(l0["w_hh_t"])
    w_big = w_big.at[:H, 4 * H:].set(l1["w_ih_t"])
    w_big = w_big.at[H:, 4 * H:].set(l1["w_hh_t"])
    V = params["fc_w_t"].shape[1]
    return {
        # (VOCAB, 1, E): leading-dim layout so dynamic row gather is a plain
        # untiled-dim index inside the kernel.
        "embed3d": params["embed"].reshape(VOCAB_SIZE, 1, EMBED_SIZE),
        "w_ih0_t": l0["w_ih_t"],                 # (E, 4H)
        "b0": l0["b"],                           # (1, 4H)  (b_ih + b_hh, layer 0)
        "w_big": w_big,                          # (2H, 8H)
        "b1": l1["b"],                           # (1, 4H)  (b_ih + b_hh, layer 1)
        "fc_w_pad": jnp.pad(params["fc_w_t"], ((0, 0), (0, VOCAB_PAD - V))),
        "fc_b_pad": jnp.pad(params["fc_b"], ((0, 0), (0, VOCAB_PAD - V))),
    }


# ---------------------------------------------------------------------------
# Full decoder forward: everything (gather/concat/LSTM/fc) inside ONE
# pallas_call; the wrapper only slices the lane padding off the output.
# ---------------------------------------------------------------------------
@jax.jit
def resnet_decoder_forward(features, captions, prep):
    N, S = captions.shape
    # nn.LSTM default batch_first=False: time axis = N, LSTM batch = S
    # (intentionally reproduces the original model's quirk).
    out2d = _decoder_pallas_call(captions.astype(jnp.int32),
                                 features.astype(jnp.float32),
                                 prep, T=N, B=S)                 # (N*S, 128)
    return out2d[:, :VOCAB_SIZE].reshape(N, S, VOCAB_SIZE)


# Pure-JAX reference for correctness checking (uses the raw params).
def _reference_forward(features, captions, params):
    emb = jnp.take(params["embed"], captions[:, :-1], axis=0)
    x = jnp.concatenate([features[:, None, :], emb], axis=1)
    H = HIDDEN_SIZE
    for layer in params["lstm"]:
        w_ih_t, w_hh_t, b = layer["w_ih_t"], layer["w_hh_t"], layer["b"]
        Bsz = x.shape[1]

        def step(carry, xt):
            hh, cc = carry
            g = xt @ w_ih_t + hh @ w_hh_t + b
            i = jax.nn.sigmoid(g[:, :H])
            f = jax.nn.sigmoid(g[:, H:2 * H])
            gg = jnp.tanh(g[:, 2 * H:3 * H])
            o = jax.nn.sigmoid(g[:, 3 * H:])
            cc = f * cc + i * gg
            hh = o * jnp.tanh(cc)
            return (hh, cc), hh

        init = (jnp.zeros((Bsz, H), jnp.float32), jnp.zeros((Bsz, H), jnp.float32))
        _, hs = lax.scan(step, init, x)
        x = hs
    return x @ params["fc_w_t"] + params["fc_b"]


def make_params(key):
    keys = jax.random.split(key, 3 + 4 * NUM_LAYERS)
    scale = 0.1
    params = {
        "embed": scale * jax.random.normal(keys[0], (VOCAB_SIZE, EMBED_SIZE), jnp.float32),
        "fc_w_t": scale * jax.random.normal(keys[1], (HIDDEN_SIZE, VOCAB_SIZE), jnp.float32),
        "fc_b": scale * jax.random.normal(keys[2], (1, VOCAB_SIZE), jnp.float32),
        "lstm": [],
    }
    for l in range(NUM_LAYERS):
        in_size = EMBED_SIZE if l == 0 else HIDDEN_SIZE
        k = keys[3 + 4 * l: 3 + 4 * (l + 1)]
        w_ih = scale * jax.random.normal(k[0], (4 * HIDDEN_SIZE, in_size), jnp.float32)
        w_hh = scale * jax.random.normal(k[1], (4 * HIDDEN_SIZE, HIDDEN_SIZE), jnp.float32)
        b_ih = scale * jax.random.normal(k[2], (4 * HIDDEN_SIZE,), jnp.float32)
        b_hh = scale * jax.random.normal(k[3], (4 * HIDDEN_SIZE,), jnp.float32)
        params["lstm"].append({
            "w_ih_t": w_ih.T,                       # (in, 4H)
            "w_hh_t": w_hh.T,                       # (H, 4H)
            "b": (b_ih + b_hh)[None, :],            # (1, 4H)
        })
    return params


if __name__ == "__main__":
    key = jax.random.PRNGKey(0)
    k_par, k_feat, k_cap = jax.random.split(key, 3)

    N, S = 4, 8   # batch of captions/features, caption length
    params = make_params(k_par)
    prep = prepare_decoder_params(params)     # one-time weight prep (padding, W_big)
    features = jax.random.normal(k_feat, (N, EMBED_SIZE), jnp.float32)
    captions = jax.random.randint(k_cap, (N, S), 0, VOCAB_SIZE, jnp.int32)

    out = jax.block_until_ready(resnet_decoder_forward(features, captions, prep))
    assert out.shape == (N, S, VOCAB_SIZE), out.shape

    ref = jax.block_until_ready(_reference_forward(features, captions, params))
    assert jnp.allclose(out, ref, rtol=1e-4, atol=1e-4), "mismatch vs JAX reference"

    print("KERNEL_OK")
</pallas_src>

<mosaic_0001>
module attributes {stable_mosaic.version = 11 : i64} {
  func.func @_decoder_kernel(%arg0: memref<4x8xi32, #tpu.memory_space<smem>>, %arg1: memref<4x32xf32, #tpu.memory_space<vmem>>, %arg2: memref<50x1x32xf32, #tpu.memory_space<vmem>>, %arg3: memref<32x128xf32, #tpu.memory_space<vmem>>, %arg4: memref<1x128xf32, #tpu.memory_space<vmem>>, %arg5: memref<64x256xf32, #tpu.memory_space<vmem>>, %arg6: memref<1x128xf32, #tpu.memory_space<vmem>>, %arg7: memref<32x128xf32, #tpu.memory_space<vmem>>, %arg8: memref<1x128xf32, #tpu.memory_space<vmem>>, %arg9: memref<32x128xf32, #tpu.memory_space<vmem>>, %arg10: memref<32x32xf32, #tpu.memory_space<vmem>>, %arg11: memref<32x128xf32, #tpu.memory_space<vmem>>, %arg12: memref<32x32xf32, #tpu.memory_space<vmem>>) attributes {dimension_semantics = [], scalar_prefetch = 0 : i64, scratch_operands = 3 : i64, tpu.core_type = #tpu.core_type<tc>} {
    %c0 = arith.constant 0 : index
    %c0_0 = arith.constant 0 : index
    %0 = vector.load %arg1[%c0, %c0_0] : memref<4x32xf32, #tpu.memory_space<vmem>>, vector<1x32xf32>
    %c0_1 = arith.constant 0 : index
    %c0_2 = arith.constant 0 : index
    %1 = vector.load %arg10[%c0_1, %c0_2] : memref<32x32xf32, #tpu.memory_space<vmem>>, vector<1x32xf32>
    tpu.vector_store %arg10[%c0_1, %c0_2], %0 {strides = array<i32>} : memref<32x32xf32, #tpu.memory_space<vmem>>, vector<1x32xf32>,
    %c0_3 = arith.constant 0 : index
    %c0_4 = arith.constant 0 : index
    %2 = memref.load %arg0[%c0_3, %c0_4] : memref<4x8xi32, #tpu.memory_space<smem>>
    %3 = arith.index_cast %2 : i32 to index
    %c0_5 = arith.constant 0 : index
    %c0_6 = arith.constant 0 : index
    %4 = vector.load %arg2[%3, %c0_5, %c0_6] : memref<50x1x32xf32, #tpu.memory_space<vmem>>, vector<1x1x32xf32>
    %5 = vector.shape_cast %4 : vector<1x1x32xf32> to vector<1x32xf32>
    %c1 = arith.constant 1 : index
    %c0_7 = arith.constant 0 : index
    %6 = vector.load %arg10[%c1, %c0_7] : memref<32x32xf32, #tpu.memory_space<vmem>>, vector<1x32xf32>
    tpu.vector_store %arg10[%c1, %c0_7], %5 {strides = array<i32>} : memref<32x32xf32, #tpu.memory_space<vmem>>, vector<1x32xf32>,
    %c0_8 = arith.constant 0 : index
    %c1_9 = arith.constant 1 : index
    %7 = memref.load %arg0[%c0_8, %c1_9] : memref<4x8xi32, #tpu.memory_space<smem>>
    %8 = arith.index_cast %7 : i32 to index
    %c0_10 = arith.constant 0 : index
    %c0_11 = arith.constant 0 : index
    %9 = vector.load %arg2[%8, %c0_10, %c0_11] : memref<50x1x32xf32, #tpu.memory_space<vmem>>, vector<1x1x32xf32>
    %10 = vector.shape_cast %9 : vector<1x1x32xf32> to vector<1x32xf32>
    %c2 = arith.constant 2 : index
    %c0_12 = arith.constant 0 : index
    %11 = vector.load %arg10[%c2, %c0_12] : memref<32x32xf32, #tpu.memory_space<vmem>>, vector<1x32xf32>
    tpu.vector_store %arg10[%c2, %c0_12], %10 {strides = array<i32>} : memref<32x32xf32, #tpu.memory_space<vmem>>, vector<1x32xf32>,
    %c0_13 = arith.constant 0 : index
    %c2_14 = arith.constant 2 : index
    %12 = memref.load %arg0[%c0_13, %c2_14] : memref<4x8xi32, #tpu.memory_space<smem>>
    %13 = arith.index_cast %12 : i32 to index
    %c0_15 = arith.constant 0 : index
    %c0_16 = arith.constant 0 : index
    %14 = vector.load %arg2[%13, %c0_15, %c0_16] : memref<50x1x32xf32, #tpu.memory_space<vmem>>, vector<1x1x32xf32>
    %15 = vector.shape_cast %14 : vector<1x1x32xf32> to vector<1x32xf32>
    %c3 = arith.constant 3 : index
    %c0_17 = arith.constant 0 : index
    %16 = vector.load %arg10[%c3, %c0_17] : memref<32x32xf32, #tpu.memory_space<vmem>>, vector<1x32xf32>
    tpu.vector_store %arg10[%c3, %c0_17], %15 {strides = array<i32>} : memref<32x32xf32, #tpu.memory_space<vmem>>, vector<1x32xf32>,
    %c0_18 = arith.constant 0 : index
    %c3_19 = arith.constant 3 : index
    %17 = memref.load %arg0[%c0_18, %c3_19] : memref<4x8xi32, #tpu.memory_space<smem>>
    %18 = arith.index_cast %17 : i32 to index
    %c0_20 = arith.constant 0 : index
    %c0_21 = arith.constant 0 : index
    %19 = vector.load %arg2[%18, %c0_20, %c0_21] : memref<50x1x32xf32, #tpu.memory_space<vmem>>, vector<1x1x32xf32>
    %20 = vector.shape_cast %19 : vector<1x1x32xf32> to vector<1x32xf32>
    %c4 = arith.constant 4 : index
    %c0_22 = arith.constant 0 : index
    %21 = vector.load %arg10[%c4, %c0_22] : memref<32x32xf32, #tpu.memory_space<vmem>>, vector<1x32xf32>
    tpu.vector_store %arg10[%c4, %c0_22], %20 {strides = array<i32>} : memref<32x32xf32, #tpu.memory_space<vmem>>, vector<1x32xf32>,
    %c0_23 = arith.constant 0 : index
    %c4_24 = arith.constant 4 : index
    %22 = memref.load %arg0[%c0_23, %c4_24] : memref<4x8xi32, #tpu.memory_space<smem>>
    %23 = arith.index_cast %22 : i32 to index
    %c0_25 = arith.constant 0 : index
    %c0_26 = arith.constant 0 : index
    %24 = vector.load %arg2[%23, %c0_25, %c0_26] : memref<50x1x32xf32, #tpu.memory_space<vmem>>, vector<1x1x32xf32>
    %25 = vector.shape_cast %24 : vector<1x1x32xf32> to vector<1x32xf32>
    %c5 = arith.constant 5 : index
    %c0_27 = arith.constant 0 : index
    %26 = vector.load %arg10[%c5, %c0_27] : memref<32x32xf32, #tpu.memory_space<vmem>>, vector<1x32xf32>
    tpu.vector_store %arg10[%c5, %c0_27], %25 {strides = array<i32>} : memref<32x32xf32, #tpu.memory_space<vmem>>, vector<1x32xf32>,
    %c0_28 = arith.constant 0 : index
    %c5_29 = arith.constant 5 : index
    %27 = memref.load %arg0[%c0_28, %c5_29] : memref<4x8xi32, #tpu.memory_space<smem>>
    %28 = arith.index_cast %27 : i32 to index
    %c0_30 = arith.constant 0 : index
    %c0_31 = arith.constant 0 : index
    %29 = vector.load %arg2[%28, %c0_30, %c0_31] : memref<50x1x32xf32, #tpu.memory_space<vmem>>, vector<1x1x32xf32>
    %30 = vector.shape_cast %29 : vector<1x1x32xf32> to vector<1x32xf32>
    %c6 = arith.constant 6 : index
    %c0_32 = arith.constant 0 : index
    %31 = vector.load %arg10[%c6, %c0_32] : memref<32x32xf32, #tpu.memory_space<vmem>>, vector<1x32xf32>
    tpu.vector_store %arg10[%c6, %c0_32], %30 {strides = array<i32>} : memref<32x32xf32, #tpu.memory_space<vmem>>, vector<1x32xf32>,
    %c0_33 = arith.constant 0 : index
    %c6_34 = arith.constant 6 : index
    %32 = memref.load %arg0[%c0_33, %c6_34] : memref<4x8xi32, #tpu.memory_space<smem>>
    %33 = arith.index_cast %32 : i32 to index
    %c0_35 = arith.constant 0 : index
    %c0_36 = arith.constant 0 : index
    %34 = vector.load %arg2[%33, %c0_35, %c0_36] : memref<50x1x32xf32, #tpu.memory_space<vmem>>, vector<1x1x32xf32>
    %35 = vector.shape_cast %34 : vector<1x1x32xf32> to vector<1x32xf32>
    %c7 = arith.constant 7 : index
    %c0_37 = arith.constant 0 : index
    %36 = vector.load %arg10[%c7, %c0_37] : memref<32x32xf32, #tpu.memory_space<vmem>>, vector<1x32xf32>
    tpu.vector_store %arg10[%c7, %c0_37], %35 {strides = array<i32>} : memref<32x32xf32, #tpu.memory_space<vmem>>, vector<1x32xf32>,
    %c1_38 = arith.constant 1 : index
    %c0_39 = arith.constant 0 : index
    %37 = vector.load %arg1[%c1_38, %c0_39] : memref<4x32xf32, #tpu.memory_space<vmem>>, vector<1x32xf32>
    %c8 = arith.constant 8 : index
    %c0_40 = arith.constant 0 : index
    %38 = vector.load %arg10[%c8, %c0_40] : memref<32x32xf32, #tpu.memory_space<vmem>>, vector<1x32xf32>
    tpu.vector_store %arg10[%c8, %c0_40], %37 {strides = array<i32>} : memref<32x32xf32, #tpu.memory_space<vmem>>, vector<1x32xf32>,
    %c1_41 = arith.constant 1 : index
    %c0_42 = arith.constant 0 : index
    %39 = memref.load %arg0[%c1_41, %c0_42] : memref<4x8xi32, #tpu.memory_space<smem>>
    %40 = arith.index_cast %39 : i32 to index
    %c0_43 = arith.constant 0 : index
    %c0_44 = arith.constant 0 : index
    %41 = vector.load %arg2[%40, %c0_43, %c0_44] : memref<50x1x32xf32, #tpu.memory_space<vmem>>, vector<1x1x32xf32>
    %42 = vector.shape_cast %41 : vector<1x1x32xf32> to vector<1x32xf32>
    %c9 = arith.constant 9 : index
    %c0_45 = arith.constant 0 : index
    %43 = vector.load %arg10[%c9, %c0_45] : memref<32x32xf32, #tpu.memory_space<vmem>>, vector<1x32xf32>
    tpu.vector_store %arg10[%c9, %c0_45], %42 {strides = array<i32>} : memref<32x32xf32, #tpu.memory_space<vmem>>, vector<1x32xf32>,
    %c1_46 = arith.constant 1 : index
    %c1_47 = arith.constant 1 : index
    %44 = memref.load %arg0[%c1_46, %c1_47] : memref<4x8xi32, #tpu.memory_space<smem>>
    %45 = arith.index_cast %44 : i32 to index
    %c0_48 = arith.constant 0 : index
    %c0_49 = arith.constant 0 : index
    %46 = vector.load %arg2[%45, %c0_48, %c0_49] : memref<50x1x32xf32, #tpu.memory_space<vmem>>, vector<1x1x32xf32>
    %47 = vector.shape_cast %46 : vector<1x1x32xf32> to vector<1x32xf32>
    %c10 = arith.constant 10 : index
    %c0_50 = arith.constant 0 : index
    %48 = vector.load %arg10[%c10, %c0_50] : memref<32x32xf32, #tpu.memory_space<vmem>>, vector<1x32xf32>
    tpu.vector_store %arg10[%c10, %c0_50], %47 {strides = array<i32>} : memref<32x32xf32, #tpu.memory_space<vmem>>, vector<1x32xf32>,
    %c1_51 = arith.constant 1 : index
    %c2_52 = arith.constant 2 : index
    %49 = memref.load %arg0[%c1_51, %c2_52] : memref<4x8xi32, #tpu.memory_space<smem>>
    %50 = arith.index_cast %49 : i32 to index
    %c0_53 = arith.constant 0 : index
    %c0_54 = arith.constant 0 : index
    %51 = vector.load %arg2[%50, %c0_53, %c0_54] : memref<50x1x32xf32, #tpu.memory_space<vmem>>, vector<1x1x32xf32>
    %52 = vector.shape_cast %51 : vector<1x1x32xf32> to vector<1x32xf32>
    %c11 = arith.constant 11 : index
    %c0_55 = arith.constant 0 : index
    %53 = vector.load %arg10[%c11, %c0_55] : memref<32x32xf32, #tpu.memory_space<vmem>>, vector<1x32xf32>
    tpu.vector_store %arg10[%c11, %c0_55], %52 {strides = array<i32>} : memref<32x32xf32, #tpu.memory_space<vmem>>, vector<1x32xf32>,
    %c1_56 = arith.constant 1 : index
    %c3_57 = arith.constant 3 : index
    %54 = memref.load %arg0[%c1_56, %c3_57] : memref<4x8xi32, #tpu.memory_space<smem>>
    %55 = arith.index_cast %54 : i32 to index
    %c0_58 = arith.constant 0 : index
    %c0_59 = arith.constant 0 : index
    %56 = vector.load %arg2[%55, %c0_58, %c0_59] : memref<50x1x32xf32, #tpu.memory_space<vmem>>, vector<1x1x32xf32>
    %57 = vector.shape_cast %56 : vector<1x1x32xf32> to vector<1x32xf32>
    %c12 = arith.constant 12 : index
    %c0_60 = arith.constant 0 : index
    %58 = vector.load %arg10[%c12, %c0_60] : memref<32x32xf32, #tpu.memory_space<vmem>>, vector<1x32xf32>
    tpu.vector_store %arg10[%c12, %c0_60], %57 {strides = array<i32>} : memref<32x32xf32, #tpu.memory_space<vmem>>, vector<1x32xf32>,
    %c1_61 = arith.constant 1 : index
    %c4_62 = arith.constant 4 : index
    %59 = memref.load %arg0[%c1_61, %c4_62] : memref<4x8xi32, #tpu.memory_space<smem>>
    %60 = arith.index_cast %59 : i32 to index
    %c0_63 = arith.constant 0 : index
    %c0_64 = arith.constant 0 : index
    %61 = vector.load %arg2[%60, %c0_63, %c0_64] : memref<50x1x32xf32, #tpu.memory_space<vmem>>, vector<1x1x32xf32>
    %62 = vector.shape_cast %61 : vector<1x1x32xf32> to vector<1x32xf32>
    %c13 = arith.constant 13 : index
    %c0_65 = arith.constant 0 : index
    %63 = vector.load %arg10[%c13, %c0_65] : memref<32x32xf32, #tpu.memory_space<vmem>>, vector<1x32xf32>
    tpu.vector_store %arg10[%c13, %c0_65], %62 {strides = array<i32>} : memref<32x32xf32, #tpu.memory_space<vmem>>, vector<1x32xf32>,
    %c1_66 = arith.constant 1 : index
    %c5_67 = arith.constant 5 : index
    %64 = memref.load %arg0[%c1_66, %c5_67] : memref<4x8xi32, #tpu.memory_space<smem>>
    %65 = arith.index_cast %64 : i32 to index
    %c0_68 = arith.constant 0 : index
    %c0_69 = arith.constant 0 : index
    %66 = vector.load %arg2[%65, %c0_68, %c0_69] : memref<50x1x32xf32, #tpu.memory_space<vmem>>, vector<1x1x32xf32>
    %67 = vector.shape_cast %66 : vector<1x1x32xf32> to vector<1x32xf32>
    %c14 = arith.constant 14 : index
    %c0_70 = arith.constant 0 : index
    %68 = vector.load %arg10[%c14, %c0_70] : memref<32x32xf32, #tpu.memory_space<vmem>>, vector<1x32xf32>
    tpu.vector_store %arg10[%c14, %c0_70], %67 {strides = array<i32>} : memref<32x32xf32, #tpu.memory_space<vmem>>, vector<1x32xf32>,
    %c1_71 = arith.constant 1 : index
    %c6_72 = arith.constant 6 : index
    %69 = memref.load %arg0[%c1_71, %c6_72] : memref<4x8xi32, #tpu.memory_space<smem>>
    %70 = arith.index_cast %69 : i32 to index
    %c0_73 = arith.constant 0 : index
    %c0_74 = arith.constant 0 : index
    %71 = vector.load %arg2[%70, %c0_73, %c0_74] : memref<50x1x32xf32, #tpu.memory_space<vmem>>, vector<1x1x32xf32>
    %72 = vector.shape_cast %71 : vector<1x1x32xf32> to vector<1x32xf32>
    %c15 = arith.constant 15 : index
    %c0_75 = arith.constant 0 : index
    %73 = vector.load %arg10[%c15, %c0_75] : memref<32x32xf32, #tpu.memory_space<vmem>>, vector<1x32xf32>
    tpu.vector_store %arg10[%c15, %c0_75], %72 {strides = array<i32>} : memref<32x32xf32, #tpu.memory_space<vmem>>, vector<1x32xf32>,
    %c2_76 = arith.constant 2 : index
    %c0_77 = arith.constant 0 : index
    %74 = vector.load %arg1[%c2_76, %c0_77] : memref<4x32xf32, #tpu.memory_space<vmem>>, vector<1x32xf32>
    %c16 = arith.constant 16 : index
    %c0_78 = arith.constant 0 : index
    %75 = vector.load %arg10[%c16, %c0_78] : memref<32x32xf32, #tpu.memory_space<vmem>>, vector<1x32xf32>
    tpu.vector_store %arg10[%c16, %c0_78], %74 {strides = array<i32>} : memref<32x32xf32, #tpu.memory_space<vmem>>, vector<1x32xf32>,
    %c2_79 = arith.constant 2 : index
    %c0_80 = arith.constant 0 : index
    %76 = memref.load %arg0[%c2_79, %c0_80] : memref<4x8xi32, #tpu.memory_space<smem>>
    %77 = arith.index_cast %76 : i32 to index
    %c0_81 = arith.constant 0 : index
    %c0_82 = arith.constant 0 : index
    %78 = vector.load %arg2[%77, %c0_81, %c0_82] : memref<50x1x32xf32, #tpu.memory_space<vmem>>, vector<1x1x32xf32>
    %79 = vector.shape_cast %78 : vector<1x1x32xf32> to vector<1x32xf32>
    %c17 = arith.constant 17 : index
    %c0_83 = arith.constant 0 : index
    %80 = vector.load %arg10[%c17, %c0_83] : memref<32x32xf32, #tpu.memory_space<vmem>>, vector<1x32xf32>
    tpu.vector_store %arg10[%c17, %c0_83], %79 {strides = array<i32>} : memref<32x32xf32, #tpu.memory_space<vmem>>, vector<1x32xf32>,
    %c2_84 = arith.constant 2 : index
    %c1_85 = arith.constant 1 : index
    %81 = memref.load %arg0[%c2_84, %c1_85] : memref<4x8xi32, #tpu.memory_space<smem>>
    %82 = arith.index_cast %81 : i32 to index
    %c0_86 = arith.constant 0 : index
    %c0_87 = arith.constant 0 : index
    %83 = vector.load %arg2[%82, %c0_86, %c0_87] : memref<50x1x32xf32, #tpu.memory_space<vmem>>, vector<1x1x32xf32>
    %84 = vector.shape_cast %83 : vector<1x1x32xf32> to vector<1x32xf32>
    %c18 = arith.constant 18 : index
    %c0_88 = arith.constant 0 : index
    %85 = vector.load %arg10[%c18, %c0_88] : memref<32x32xf32, #tpu.memory_space<vmem>>, vector<1x32xf32>
    tpu.vector_store %arg10[%c18, %c0_88], %84 {strides = array<i32>} : memref<32x32xf32, #tpu.memory_space<vmem>>, vector<1x32xf32>,
    %c2_89 = arith.constant 2 : index
    %c2_90 = arith.constant 2 : index
    %86 = memref.load %arg0[%c2_89, %c2_90] : memref<4x8xi32, #tpu.memory_space<smem>>
    %87 = arith.index_cast %86 : i32 to index
    %c0_91 = arith.constant 0 : index
    %c0_92 = arith.constant 0 : index
    %88 = vector.load %arg2[%87, %c0_91, %c0_92] : memref<50x1x32xf32, #tpu.memory_space<vmem>>, vector<1x1x32xf32>
    %89 = vector.shape_cast %88 : vector<1x1x32xf32> to vector<1x32xf32>
    %c19 = arith.constant 19 : index
    %c0_93 = arith.constant 0 : index
    %90 = vector.load %arg10[%c19, %c0_93] : memref<32x32xf32, #tpu.memory_space<vmem>>, vector<1x32xf32>
    tpu.vector_store %arg10[%c19, %c0_93], %89 {strides = array<i32>} : memref<32x32xf32, #tpu.memory_space<vmem>>, vector<1x32xf32>,
    %c2_94 = arith.constant 2 : index
    %c3_95 = arith.constant 3 : index
    %91 = memref.load %arg0[%c2_94, %c3_95] : memref<4x8xi32, #tpu.memory_space<smem>>
    %92 = arith.index_cast %91 : i32 to index
    %c0_96 = arith.constant 0 : index
    %c0_97 = arith.constant 0 : index
    %93 = vector.load %arg2[%92, %c0_96, %c0_97] : memref<50x1x32xf32, #tpu.memory_space<vmem>>, vector<1x1x32xf32>
    %94 = vector.shape_cast %93 : vector<1x1x32xf32> to vector<1x32xf32>
    %c20 = arith.constant 20 : index
    %c0_98 = arith.constant 0 : index
    %95 = vector.load %arg10[%c20, %c0_98] : memref<32x32xf32, #tpu.memory_space<vmem>>, vector<1x32xf32>
    tpu.vector_store %arg10[%c20, %c0_98], %94 {strides = array<i32>} : memref<32x32xf32, #tpu.memory_space<vmem>>, vector<1x32xf32>,
    %c2_99 = arith.constant 2 : index
    %c4_100 = arith.constant 4 : index
    %96 = memref.load %arg0[%c2_99, %c4_100] : memref<4x8xi32, #tpu.memory_space<smem>>
    %97 = arith.index_cast %96 : i32 to index
    %c0_101 = arith.constant 0 : index
    %c0_102 = arith.constant 0 : index
    %98 = vector.load %arg2[%97, %c0_101, %c0_102] : memref<50x1x32xf32, #tpu.memory_space<vmem>>, vector<1x1x32xf32>
    %99 = vector.shape_cast %98 : vector<1x1x32xf32> to vector<1x32xf32>
    %c21 = arith.constant 21 : index
    %c0_103 = arith.constant 0 : index
    %100 = vector.load %arg10[%c21, %c0_103] : memref<32x32xf32, #tpu.memory_space<vmem>>, vector<1x32xf32>
    tpu.vector_store %arg10[%c21, %c0_103], %99 {strides = array<i32>} : memref<32x32xf32, #tpu.memory_space<vmem>>, vector<1x32xf32>,
    %c2_104 = arith.constant 2 : index
    %c5_105 = arith.constant 5 : index
    %101 = memref.load %arg0[%c2_104, %c5_105] : memref<4x8xi32, #tpu.memory_space<smem>>
    %102 = arith.index_cast %101 : i32 to index
    %c0_106 = arith.constant 0 : index
    %c0_107 = arith.constant 0 : index
    %103 = vector.load %arg2[%102, %c0_106, %c0_107] : memref<50x1x32xf32, #tpu.memory_space<vmem>>, vector<1x1x32xf32>
    %104 = vector.shape_cast %103 : vector<1x1x32xf32> to vector<1x32xf32>
    %c22 = arith.constant 22 : index
    %c0_108 = arith.constant 0 : index
    %105 = vector.load %arg10[%c22, %c0_108] : memref<32x32xf32, #tpu.memory_space<vmem>>, vector<1x32xf32>
    tpu.vector_store %arg10[%c22, %c0_108], %104 {strides = array<i32>} : memref<32x32xf32, #tpu.memory_space<vmem>>, vector<1x32xf32>,
    %c2_109 = arith.constant 2 : index
    %c6_110 = arith.constant 6 : index
    %106 = memref.load %arg0[%c2_109, %c6_110] : memref<4x8xi32, #tpu.memory_space<smem>>
    %107 = arith.index_cast %106 : i32 to index
    %c0_111 = arith.constant 0 : index
    %c0_112 = arith.constant 0 : index
    %108 = vector.load %arg2[%107, %c0_111, %c0_112] : memref<50x1x32xf32, #tpu.memory_space<vmem>>, vector<1x1x32xf32>
    %109 = vector.shape_cast %108 : vector<1x1x32xf32> to vector<1x32xf32>
    %c23 = arith.constant 23 : index
    %c0_113 = arith.constant 0 : index
    %110 = vector.load %arg10[%c23, %c0_113] : memref<32x32xf32, #tpu.memory_space<vmem>>, vector<1x32xf32>
    tpu.vector_store %arg10[%c23, %c0_113], %109 {strides = array<i32>} : memref<32x32xf32, #tpu.memory_space<vmem>>, vector<1x32xf32>,
    %c3_114 = arith.constant 3 : index
    %c0_115 = arith.constant 0 : index
    %111 = vector.load %arg1[%c3_114, %c0_115] : memref<4x32xf32, #tpu.memory_space<vmem>>, vector<1x32xf32>
    %c24 = arith.constant 24 : index
    %c0_116 = arith.constant 0 : index
    %112 = vector.load %arg10[%c24, %c0_116] : memref<32x32xf32, #tpu.memory_space<vmem>>, vector<1x32xf32>
    tpu.vector_store %arg10[%c24, %c0_116], %111 {strides = array<i32>} : memref<32x32xf32, #tpu.memory_space<vmem>>, vector<1x32xf32>,
    %c3_117 = arith.constant 3 : index
    %c0_118 = arith.constant 0 : index
    %113 = memref.load %arg0[%c3_117, %c0_118] : memref<4x8xi32, #tpu.memory_space<smem>>
    %114 = arith.index_cast %113 : i32 to index
    %c0_119 = arith.constant 0 : index
    %c0_120 = arith.constant 0 : index
    %115 = vector.load %arg2[%114, %c0_119, %c0_120] : memref<50x1x32xf32, #tpu.memory_space<vmem>>, vector<1x1x32xf32>
    %116 = vector.shape_cast %115 : vector<1x1x32xf32> to vector<1x32xf32>
    %c25 = arith.constant 25 : index
    %c0_121 = arith.constant 0 : index
    %117 = vector.load %arg10[%c25, %c0_121] : memref<32x32xf32, #tpu.memory_space<vmem>>, vector<1x32xf32>
    tpu.vector_store %arg10[%c25, %c0_121], %116 {strides = array<i32>} : memref<32x32xf32, #tpu.memory_space<vmem>>, vector<1x32xf32>,
    %c3_122 = arith.constant 3 : index
    %c1_123 = arith.constant 1 : index
    %118 = memref.load %arg0[%c3_122, %c1_123] : memref<4x8xi32, #tpu.memory_space<smem>>
    %119 = arith.index_cast %118 : i32 to index
    %c0_124 = arith.constant 0 : index
    %c0_125 = arith.constant 0 : index
    %120 = vector.load %arg2[%119, %c0_124, %c0_125] : memref<50x1x32xf32, #tpu.memory_space<vmem>>, vector<1x1x32xf32>
    %121 = vector.shape_cast %120 : vector<1x1x32xf32> to vector<1x32xf32>
    %c26 = arith.constant 26 : index
    %c0_126 = arith.constant 0 : index
    %122 = vector.load %arg10[%c26, %c0_126] : memref<32x32xf32, #tpu.memory_space<vmem>>, vector<1x32xf32>
    tpu.vector_store %arg10[%c26, %c0_126], %121 {strides = array<i32>} : memref<32x32xf32, #tpu.memory_space<vmem>>, vector<1x32xf32>,
    %c3_127 = arith.constant 3 : index
    %c2_128 = arith.constant 2 : index
    %123 = memref.load %arg0[%c3_127, %c2_128] : memref<4x8xi32, #tpu.memory_space<smem>>
    %124 = arith.index_cast %123 : i32 to index
    %c0_129 = arith.constant 0 : index
    %c0_130 = arith.constant 0 : index
    %125 = vector.load %arg2[%124, %c0_129, %c0_130] : memref<50x1x32xf32, #tpu.memory_space<vmem>>, vector<1x1x32xf32>
    %126 = vector.shape_cast %125 : vector<1x1x32xf32> to vector<1x32xf32>
    %c27 = arith.constant 27 : index
    %c0_131 = arith.constant 0 : index
    %127 = vector.load %arg10[%c27, %c0_131] : memref<32x32xf32, #tpu.memory_space<vmem>>, vector<1x32xf32>
    tpu.vector_store %arg10[%c27, %c0_131], %126 {strides = array<i32>} : memref<32x32xf32, #tpu.memory_space<vmem>>, vector<1x32xf32>,
    %c3_132 = arith.constant 3 : index
    %c3_133 = arith.constant 3 : index
    %128 = memref.load %arg0[%c3_132, %c3_133] : memref<4x8xi32, #tpu.memory_space<smem>>
    %129 = arith.index_cast %128 : i32 to index
    %c0_134 = arith.constant 0 : index
    %c0_135 = arith.constant 0 : index
    %130 = vector.load %arg2[%129, %c0_134, %c0_135] : memref<50x1x32xf32, #tpu.memory_space<vmem>>, vector<1x1x32xf32>
    %131 = vector.shape_cast %130 : vector<1x1x32xf32> to vector<1x32xf32>
    %c28 = arith.constant 28 : index
    %c0_136 = arith.constant 0 : index
    %132 = vector.load %arg10[%c28, %c0_136] : memref<32x32xf32, #tpu.memory_space<vmem>>, vector<1x32xf32>
    tpu.vector_store %arg10[%c28, %c0_136], %131 {strides = array<i32>} : memref<32x32xf32, #tpu.memory_space<vmem>>, vector<1x32xf32>,
    %c3_137 = arith.constant 3 : index
    %c4_138 = arith.constant 4 : index
    %133 = memref.load %arg0[%c3_137, %c4_138] : memref<4x8xi32, #tpu.memory_space<smem>>
    %134 = arith.index_cast %133 : i32 to index
    %c0_139 = arith.constant 0 : index
    %c0_140 = arith.constant 0 : index
    %135 = vector.load %arg2[%134, %c0_139, %c0_140] : memref<50x1x32xf32, #tpu.memory_space<vmem>>, vector<1x1x32xf32>
    %136 = vector.shape_cast %135 : vector<1x1x32xf32> to vector<1x32xf32>
    %c29 = arith.constant 29 : index
    %c0_141 = arith.constant 0 : index
    %137 = vector.load %arg10[%c29, %c0_141] : memref<32x32xf32, #tpu.memory_space<vmem>>, vector<1x32xf32>
    tpu.vector_store %arg10[%c29, %c0_141], %136 {strides = array<i32>} : memref<32x32xf32, #tpu.memory_space<vmem>>, vector<1x32xf32>,
    %c3_142 = arith.constant 3 : index
    %c5_143 = arith.constant 5 : index
    %138 = memref.load %arg0[%c3_142, %c5_143] : memref<4x8xi32, #tpu.memory_space<smem>>
    %139 = arith.index_cast %138 : i32 to index
    %c0_144 = arith.constant 0 : index
    %c0_145 = arith.constant 0 : index
    %140 = vector.load %arg2[%139, %c0_144, %c0_145] : memref<50x1x32xf32, #tpu.memory_space<vmem>>, vector<1x1x32xf32>
    %141 = vector.shape_cast %140 : vector<1x1x32xf32> to vector<1x32xf32>
    %c30 = arith.constant 30 : index
    %c0_146 = arith.constant 0 : index
    %142 = vector.load %arg10[%c30, %c0_146] : memref<32x32xf32, #tpu.memory_space<vmem>>, vector<1x32xf32>
    tpu.vector_store %arg10[%c30, %c0_146], %141 {strides = array<i32>} : memref<32x32xf32, #tpu.memory_space<vmem>>, vector<1x32xf32>,
    %c3_147 = arith.constant 3 : index
    %c6_148 = arith.constant 6 : index
    %143 = memref.load %arg0[%c3_147, %c6_148] : memref<4x8xi32, #tpu.memory_space<smem>>
    %144 = arith.index_cast %143 : i32 to index
    %c0_149 = arith.constant 0 : index
    %c0_150 = arith.constant 0 : index
    %145 = vector.load %arg2[%144, %c0_149, %c0_150] : memref<50x1x32xf32, #tpu.memory_space<vmem>>, vector<1x1x32xf32>
    %146 = vector.shape_cast %145 : vector<1x1x32xf32> to vector<1x32xf32>
    %c31 = arith.constant 31 : index
    %c0_151 = arith.constant 0 : index
    %147 = vector.load %arg10[%c31, %c0_151] : memref<32x32xf32, #tpu.memory_space<vmem>>, vector<1x32xf32>
    tpu.vector_store %arg10[%c31, %c0_151], %146 {strides = array<i32>} : memref<32x32xf32, #tpu.memory_space<vmem>>, vector<1x32xf32>,
    %c0_152 = arith.constant 0 : index
    %c0_153 = arith.constant 0 : index
    %148 = vector.load %arg10[%c0_152, %c0_153] : memref<32x32xf32, #tpu.memory_space<vmem>>, vector<32x32xf32>
    %c0_154 = arith.constant 0 : index
    %c0_155 = arith.constant 0 : index
    %149 = vector.load %arg3[%c0_154, %c0_155] : memref<32x128xf32, #tpu.memory_space<vmem>>, vector<32x128xf32>
    %cst = arith.constant dense<0.000000e+00> : vector<32x128xf32>
    %150 = tpu.matmul %148, %149, %cst {dimension_numbers = #tpu.dot_dimension_numbers<[1], [0], [0], [1], [0, 0, 1, 1], [], []>} : vector<32x32xf32>, vector<32x128xf32>, vector<32x128xf32> -> vector<32x128xf32>
    %c0_156 = arith.constant 0 : index
    %c0_157 = arith.constant 0 : index
    %151 = vector.load %arg4[%c0_156, %c0_157] : memref<1x128xf32, #tpu.memory_space<vmem>>, vector<1x128xf32>
    %152 = vector.broadcast %151 : vector<1x128xf32> to vector<32x128xf32>
    %153 = arith.addf %150, %152 : vector<32x128xf32>
    %c0_158 = arith.constant 0 : index
    %c0_159 = arith.constant 0 : index
    %154 = vector.load %arg11[%c0_158, %c0_159] : memref<32x128xf32, #tpu.memory_space<vmem>>, vector<32x128xf32>
    tpu.vector_store %arg11[%c0_158, %c0_159], %153 {strides = array<i32>} : memref<32x128xf32, #tpu.memory_space<vmem>>, vector<32x128xf32>,
    %c0_160 = arith.constant 0 : index
    %c0_161 = arith.constant 0 : index
    %155 = vector.load %arg5[%c0_160, %c0_161] : memref<64x256xf32, #tpu.memory_space<vmem>>, vector<64x256xf32>
    %c0_162 = arith.constant 0 : index
    %c0_163 = arith.constant 0 : index
    %156 = vector.load %arg6[%c0_162, %c0_163] : memref<1x128xf32, #tpu.memory_space<vmem>>, vector<1x128xf32>
    %cst_164 = arith.constant 0.000000e+00 : f32
    %157 = vector.broadcast %cst_164 : f32 to vector<8x32xf32>
    %c0_165 = arith.constant 0 : index
    %c0_166 = arith.constant 0 : index
    %158 = vector.load %arg11[%c0_165, %c0_166] : memref<32x128xf32, #tpu.memory_space<vmem>>, vector<8x128xf32>
    %159 = arith.negf %158 : vector<8x128xf32>
    %160 = math.exp %159 : vector<8x128xf32>
    %cst_167 = arith.constant 1.000000e+00 : f32
    %161 = vector.broadcast %cst_167 : f32 to vector<8x128xf32>
    %162 = arith.addf %161, %160 : vector<8x128xf32>
    %163 = arith.divf %161, %162 : vector<8x128xf32>
    %164 = math.tanh %158 : vector<8x128xf32>
    %165 = vector.extract_strided_slice %163 {offsets = [0, 0], sizes = [8, 32], strides = [1, 1]} : vector<8x128xf32> to vector<8x32xf32>
    %166 = vector.extract_strided_slice %163 {offsets = [0, 32], sizes = [8, 32], strides = [1, 1]} : vector<8x128xf32> to vector<8x32xf32>
    %167 = vector.extract_strided_slice %164 {offsets = [0, 64], sizes = [8, 32], strides = [1, 1]} : vector<8x128xf32> to vector<8x32xf32>
    %168 = vector.extract_strided_slice %163 {offsets = [0, 96], sizes = [8, 32], strides = [1, 1]} : vector<8x128xf32> to vector<8x32xf32>
    %169 = arith.mulf %166, %157 : vector<8x32xf32>
    %170 = arith.mulf %165, %167 : vector<8x32xf32>
    %171 = arith.addf %169, %170 : vector<8x32xf32>
    %172 = math.tanh %171 : vector<8x32xf32>
    %173 = arith.mulf %168, %172 : vector<8x32xf32>
    %c0_i32 = arith.constant 0 : i32
    %174 = tpu.concatenate %173, %157 in 1 : vector<8x32xf32>, vector<8x32xf32> -> vector<8x64xf32>
    %cst_168 = arith.constant dense<0.000000e+00> : vector<8x256xf32>
    %175 = tpu.matmul %174, %155, %cst_168 {dimension_numbers = #tpu.dot_dimension_numbers<[1], [0], [0], [1], [0, 0, 1, 1], [], []>} : vector<8x64xf32>, vector<64x256xf32>, vector<8x256xf32> -> vector<8x256xf32>
    %c1_i32 = arith.constant 1 : i32
    %176 = arith.addi %c0_i32, %c1_i32 : i32
    %c8_i32 = arith.constant 8 : i32
    %177 = arith.muli %176, %c8_i32 : i32
    %178 = tpu.assume_multiple %177, 8 : i32
    %179 = arith.index_cast %178 : i32 to index
    %c0_169 = arith.constant 0 : index
    %180 = vector.load %arg11[%179, %c0_169] : memref<32x128xf32, #tpu.memory_space<vmem>>, vector<8x128xf32>
    %181 = vector.extract_strided_slice %175 {offsets = [0, 0], sizes = [8, 128], strides = [1, 1]} : vector<8x256xf32> to vector<8x128xf32>
    %182 = arith.addf %180, %181 : vector<8x128xf32>
    %183 = arith.negf %182 : vector<8x128xf32>
    %184 = math.exp %183 : vector<8x128xf32>
    %cst_170 = arith.constant 1.000000e+00 : f32
    %185 = vector.broadcast %cst_170 : f32 to vector<8x128xf32>
    %186 = arith.addf %185, %184 : vector<8x128xf32>
    %187 = arith.divf %185, %186 : vector<8x128xf32>
    %188 = math.tanh %182 : vector<8x128xf32>
    %189 = vector.extract_strided_slice %187 {offsets = [0, 0], sizes = [8, 32], strides = [1, 1]} : vector<8x128xf32> to vector<8x32xf32>
    %190 = vector.extract_strided_slice %187 {offsets = [0, 32], sizes = [8, 32], strides = [1, 1]} : vector<8x128xf32> to vector<8x32xf32>
    %191 = vector.extract_strided_slice %188 {offsets = [0, 64], sizes = [8, 32], strides = [1, 1]} : vector<8x128xf32> to vector<8x32xf32>
    %192 = vector.extract_strided_slice %187 {offsets = [0, 96], sizes = [8, 32], strides = [1, 1]} : vector<8x128xf32> to vector<8x32xf32>
    %193 = arith.mulf %190, %171 : vector<8x32xf32>
    %194 = arith.mulf %189, %191 : vector<8x32xf32>
    %195 = arith.addf %193, %194 : vector<8x32xf32>
    %196 = math.tanh %195 : vector<8x32xf32>
    %197 = arith.mulf %192, %196 : vector<8x32xf32>
    %198 = vector.extract_strided_slice %175 {offsets = [0, 128], sizes = [8, 128], strides = [1, 1]} : vector<8x256xf32> to vector<8x128xf32>
    %199 = vector.broadcast %156 : vector<1x128xf32> to vector<8x128xf32>
    %200 = arith.addf %198, %199 : vector<8x128xf32>
    %201 = arith.negf %200 : vector<8x128xf32>
    %202 = math.exp %201 : vector<8x128xf32>
    %cst_171 = arith.constant 1.000000e+00 : f32
    %203 = vector.broadcast %cst_171 : f32 to vector<8x128xf32>
    %204 = arith.addf %203, %202 : vector<8x128xf32>
    %205 = arith.divf %203, %204 : vector<8x128xf32>
    %206 = math.tanh %200 : vector<8x128xf32>
    %207 = vector.extract_strided_slice %205 {offsets = [0, 0], sizes = [8, 32], strides = [1, 1]} : vector<8x128xf32> to vector<8x32xf32>
    %208 = vector.extract_strided_slice %205 {offsets = [0, 32], sizes = [8, 32], strides = [1, 1]} : vector<8x128xf32> to vector<8x32xf32>
    %209 = vector.extract_strided_slice %206 {offsets = [0, 64], sizes = [8, 32], strides = [1, 1]} : vector<8x128xf32> to vector<8x32xf32>
    %210 = vector.extract_strided_slice %205 {offsets = [0, 96], sizes = [8, 32], strides = [1, 1]} : vector<8x128xf32> to vector<8x32xf32>
    %211 = arith.mulf %208, %157 : vector<8x32xf32>
    %212 = arith.mulf %207, %209 : vector<8x32xf32>
    %213 = arith.addf %211, %212 : vector<8x32xf32>
    %214 = math.tanh %213 : vector<8x32xf32>
    %215 = arith.mulf %210, %214 : vector<8x32xf32>
    %c8_i32_172 = arith.constant 8 : i32
    %216 = arith.muli %c0_i32, %c8_i32_172 : i32
    %217 = tpu.assume_multiple %216, 8 : i32
    %218 = arith.index_cast %217 : i32 to index
    %c0_173 = arith.constant 0 : index
    %219 = vector.load %arg12[%218, %c0_173] : memref<32x32xf32, #tpu.memory_space<vmem>>, vector<8x32xf32>
    tpu.vector_store %arg12[%218, %c0_173], %215 {strides = array<i32>} : memref<32x32xf32, #tpu.memory_space<vmem>>, vector<8x32xf32>,
    %c1_i32_174 = arith.constant 1 : i32
    %220 = tpu.concatenate %197, %215 in 1 : vector<8x32xf32>, vector<8x32xf32> -> vector<8x64xf32>
    %cst_175 = arith.constant dense<0.000000e+00> : vector<8x256xf32>
    %221 = tpu.matmul %220, %155, %cst_175 {dimension_numbers = #tpu.dot_dimension_numbers<[1], [0], [0], [1], [0, 0, 1, 1], [], []>} : vector<8x64xf32>, vector<64x256xf32>, vector<8x256xf32> -> vector<8x256xf32>
    %c1_i32_176 = arith.constant 1 : i32
    %222 = arith.addi %c1_i32_174, %c1_i32_176 : i32
    %c8_i32_177 = arith.constant 8 : i32
    %223 = arith.muli %222, %c8_i32_177 : i32
    %224 = tpu.assume_multiple %223, 8 : i32
    %225 = arith.index_cast %224 : i32 to index
    %c0_178 = arith.constant 0 : index
    %226 = vector.load %arg11[%225, %c0_178] : memref<32x128xf32, #tpu.memory_space<vmem>>, vector<8x128xf32>
    %227 = vector.extract_strided_slice %221 {offsets = [0, 0], sizes = [8, 128], strides = [1, 1]} : vector<8x256xf32> to vector<8x128xf32>
    %228 = arith.addf %226, %227 : vector<8x128xf32>
    %229 = arith.negf %228 : vector<8x128xf32>
    %230 = math.exp %229 : vector<8x128xf32>
    %cst_179 = arith.constant 1.000000e+00 : f32
    %231 = vector.broadcast %cst_179 : f32 to vector<8x128xf32>
    %232 = arith.addf %231, %230 : vector<8x128xf32>
    %233 = arith.divf %231, %232 : vector<8x128xf32>
    %234 = math.tanh %228 : vector<8x128xf32>
    %235 = vector.extract_strided_slice %233 {offsets = [0, 0], sizes = [8, 32], strides = [1, 1]} : vector<8x128xf32> to vector<8x32xf32>
    %236 = vector.extract_strided_slice %233 {offsets = [0, 32], sizes = [8, 32], strides = [1, 1]} : vector<8x128xf32> to vector<8x32xf32>
    %237 = vector.extract_strided_slice %234 {offsets = [0, 64], sizes = [8, 32], strides = [1, 1]} : vector<8x128xf32> to vector<8x32xf32>
    %238 = vector.extract_strided_slice %233 {offsets = [0, 96], sizes = [8, 32], strides = [1, 1]} : vector<8x128xf32> to vector<8x32xf32>
    %239 = arith.mulf %236, %195 : vector<8x32xf32>
    %240 = arith.mulf %235, %237 : vector<8x32xf32>
    %241 = arith.addf %239, %240 : vector<8x32xf32>
    %242 = math.tanh %241 : vector<8x32xf32>
    %243 = arith.mulf %238, %242 : vector<8x32xf32>
    %244 = vector.extract_strided_slice %221 {offsets = [0, 128], sizes = [8, 128], strides = [1, 1]} : vector<8x256xf32> to vector<8x128xf32>
    %245 = vector.broadcast %156 : vector<1x128xf32> to vector<8x128xf32>
    %246 = arith.addf %244, %245 : vector<8x128xf32>
    %247 = arith.negf %246 : vector<8x128xf32>
    %248 = math.exp %247 : vector<8x128xf32>
    %cst_180 = arith.constant 1.000000e+00 : f32
    %249 = vector.broadcast %cst_180 : f32 to vector<8x128xf32>
    %250 = arith.addf %249, %248 : vector<8x128xf32>
    %251 = arith.divf %249, %250 : vector<8x128xf32>
    %252 = math.tanh %246 : vector<8x128xf32>
    %253 = vector.extract_strided_slice %251 {offsets = [0, 0], sizes = [8, 32], strides = [1, 1]} : vector<8x128xf32> to vector<8x32xf32>
    %254 = vector.extract_strided_slice %251 {offsets = [0, 32], sizes = [8, 32], strides = [1, 1]} : vector<8x128xf32> to vector<8x32xf32>
    %255 = vector.extract_strided_slice %252 {offsets = [0, 64], sizes = [8, 32], strides = [1, 1]} : vector<8x128xf32> to vector<8x32xf32>
    %256 = vector.extract_strided_slice %251 {offsets = [0, 96], sizes = [8, 32], strides = [1, 1]} : vector<8x128xf32> to vector<8x32xf32>
    %257 = arith.mulf %254, %213 : vector<8x32xf32>
    %258 = arith.mulf %253, %255 : vector<8x32xf32>
    %259 = arith.addf %257, %258 : vector<8x32xf32>
    %260 = math.tanh %259 : vector<8x32xf32>
    %261 = arith.mulf %256, %260 : vector<8x32xf32>
    %c8_i32_181 = arith.constant 8 : i32
    %262 = arith.muli %c1_i32_174, %c8_i32_181 : i32
    %263 = tpu.assume_multiple %262, 8 : i32
    %264 = arith.index_cast %263 : i32 to index
    %c0_182 = arith.constant 0 : index
    %265 = vector.load %arg12[%264, %c0_182] : memref<32x32xf32, #tpu.memory_space<vmem>>, vector<8x32xf32>
    tpu.vector_store %arg12[%264, %c0_182], %261 {strides = array<i32>} : memref<32x32xf32, #tpu.memory_space<vmem>>, vector<8x32xf32>,
    %c2_i32 = arith.constant 2 : i32
    %266 = tpu.concatenate %243, %261 in 1 : vector<8x32xf32>, vector<8x32xf32> -> vector<8x64xf32>
    %cst_183 = arith.constant dense<0.000000e+00> : vector<8x256xf32>
    %267 = tpu.matmul %266, %155, %cst_183 {dimension_numbers = #tpu.dot_dimension_numbers<[1], [0], [0], [1], [0, 0, 1, 1], [], []>} : vector<8x64xf32>, vector<64x256xf32>, vector<8x256xf32> -> vector<8x256xf32>
    %c1_i32_184 = arith.constant 1 : i32
    %268 = arith.addi %c2_i32, %c1_i32_184 : i32
    %c8_i32_185 = arith.constant 8 : i32
    %269 = arith.muli %268, %c8_i32_185 : i32
    %270 = tpu.assume_multiple %269, 8 : i32
    %271 = arith.index_cast %270 : i32 to index
    %c0_186 = arith.constant 0 : index
    %272 = vector.load %arg11[%271, %c0_186] : memref<32x128xf32, #tpu.memory_space<vmem>>, vector<8x128xf32>
    %273 = vector.extract_strided_slice %267 {offsets = [0, 0], sizes = [8, 128], strides = [1, 1]} : vector<8x256xf32> to vector<8x128xf32>
    %274 = arith.addf %272, %273 : vector<8x128xf32>
    %275 = arith.negf %274 : vector<8x128xf32>
    %276 = math.exp %275 : vector<8x128xf32>
    %cst_187 = arith.constant 1.000000e+00 : f32
    %277 = vector.broadcast %cst_187 : f32 to vector<8x128xf32>
    %278 = arith.addf %277, %276 : vector<8x128xf32>
    %279 = arith.divf %277, %278 : vector<8x128xf32>
    %280 = math.tanh %274 : vector<8x128xf32>
    %281 = vector.extract_strided_slice %279 {offsets = [0, 0], sizes = [8, 32], strides = [1, 1]} : vector<8x128xf32> to vector<8x32xf32>
    %282 = vector.extract_strided_slice %279 {offsets = [0, 32], sizes = [8, 32], strides = [1, 1]} : vector<8x128xf32> to vector<8x32xf32>
    %283 = vector.extract_strided_slice %280 {offsets = [0, 64], sizes = [8, 32], strides = [1, 1]} : vector<8x128xf32> to vector<8x32xf32>
    %284 = vector.extract_strided_slice %279 {offsets = [0, 96], sizes = [8, 32], strides = [1, 1]} : vector<8x128xf32> to vector<8x32xf32>
    %285 = arith.mulf %282, %241 : vector<8x32xf32>
    %286 = arith.mulf %281, %283 : vector<8x32xf32>
    %287 = arith.addf %285, %286 : vector<8x32xf32>
    %288 = math.tanh %287 : vector<8x32xf32>
    %289 = arith.mulf %284, %288 : vector<8x32xf32>
    %290 = vector.extract_strided_slice %267 {offsets = [0, 128], sizes = [8, 128], strides = [1, 1]} : vector<8x256xf32> to vector<8x128xf32>
    %291 = vector.broadcast %156 : vector<1x128xf32> to vector<8x128xf32>
    %292 = arith.addf %290, %291 : vector<8x128xf32>
    %293 = arith.negf %292 : vector<8x128xf32>
    %294 = math.exp %293 : vector<8x128xf32>
    %cst_188 = arith.constant 1.000000e+00 : f32
    %295 = vector.broadcast %cst_188 : f32 to vector<8x128xf32>
    %296 = arith.addf %295, %294 : vector<8x128xf32>
    %297 = arith.divf %295, %296 : vector<8x128xf32>
    %298 = math.tanh %292 : vector<8x128xf32>
    %299 = vector.extract_strided_slice %297 {offsets = [0, 0], sizes = [8, 32], strides = [1, 1]} : vector<8x128xf32> to vector<8x32xf32>
    %300 = vector.extract_strided_slice %297 {offsets = [0, 32], sizes = [8, 32], strides = [1, 1]} : vector<8x128xf32> to vector<8x32xf32>
    %301 = vector.extract_strided_slice %298 {offsets = [0, 64], sizes = [8, 32], strides = [1, 1]} : vector<8x128xf32> to vector<8x32xf32>
    %302 = vector.extract_strided_slice %297 {offsets = [0, 96], sizes = [8, 32], strides = [1, 1]} : vector<8x128xf32> to vector<8x32xf32>
    %303 = arith.mulf %300, %259 : vector<8x32xf32>
    %304 = arith.mulf %299, %301 : vector<8x32xf32>
    %305 = arith.addf %303, %304 : vector<8x32xf32>
    %306 = math.tanh %305 : vector<8x32xf32>
    %307 = arith.mulf %302, %306 : vector<8x32xf32>
    %c8_i32_189 = arith.constant 8 : i32
    %308 = arith.muli %c2_i32, %c8_i32_189 : i32
    %309 = tpu.assume_multiple %308, 8 : i32
    %310 = arith.index_cast %309 : i32 to index
    %c0_190 = arith.constant 0 : index
    %311 = vector.load %arg12[%310, %c0_190] : memref<32x32xf32, #tpu.memory_space<vmem>>, vector<8x32xf32>
    tpu.vector_store %arg12[%310, %c0_190], %307 {strides = array<i32>} : memref<32x32xf32, #tpu.memory_space<vmem>>, vector<8x32xf32>,
    %c3_i32 = arith.constant 3 : i32
    %312 = tpu.concatenate %289, %307 in 1 : vector<8x32xf32>, vector<8x32xf32> -> vector<8x64xf32>
    %cst_191 = arith.constant dense<0.000000e+00> : vector<8x256xf32>
    %313 = tpu.matmul %312, %155, %cst_191 {dimension_numbers = #tpu.dot_dimension_numbers<[1], [0], [0], [1], [0, 0, 1, 1], [], []>} : vector<8x64xf32>, vector<64x256xf32>, vector<8x256xf32> -> vector<8x256xf32>
    %314 = vector.extract_strided_slice %313 {offsets = [0, 128], sizes = [8, 128], strides = [1, 1]} : vector<8x256xf32> to vector<8x128xf32>
    %315 = vector.broadcast %156 : vector<1x128xf32> to vector<8x128xf32>
    %316 = arith.addf %314, %315 : vector<8x128xf32>
    %317 = arith.negf %316 : vector<8x128xf32>
    %318 = math.exp %317 : vector<8x128xf32>
    %cst_192 = arith.constant 1.000000e+00 : f32
    %319 = vector.broadcast %cst_192 : f32 to vector<8x128xf32>
    %320 = arith.addf %319, %318 : vector<8x128xf32>
    %321 = arith.divf %319, %320 : vector<8x128xf32>
    %322 = math.tanh %316 : vector<8x128xf32>
    %323 = vector.extract_strided_slice %321 {offsets = [0, 0], sizes = [8, 32], strides = [1, 1]} : vector<8x128xf32> to vector<8x32xf32>
    %324 = vector.extract_strided_slice %321 {offsets = [0, 32], sizes = [8, 32], strides = [1, 1]} : vector<8x128xf32> to vector<8x32xf32>
    %325 = vector.extract_strided_slice %322 {offsets = [0, 64], sizes = [8, 32], strides = [1, 1]} : vector<8x128xf32> to vector<8x32xf32>
    %326 = vector.extract_strided_slice %321 {offsets = [0, 96], sizes = [8, 32], strides = [1, 1]} : vector<8x128xf32> to vector<8x32xf32>
    %327 = arith.mulf %324, %305 : vector<8x32xf32>
    %328 = arith.mulf %323, %325 : vector<8x32xf32>
    %329 = arith.addf %327, %328 : vector<8x32xf32>
    %330 = math.tanh %329 : vector<8x32xf32>
    %331 = arith.mulf %326, %330 : vector<8x32xf32>
    %c24_193 = arith.constant 24 : index
    %c0_194 = arith.constant 0 : index
    %332 = vector.load %arg12[%c24_193, %c0_194] : memref<32x32xf32, #tpu.memory_space<vmem>>, vector<8x32xf32>
    tpu.vector_store %arg12[%c24_193, %c0_194], %331 {strides = array<i32>} : memref<32x32xf32, #tpu.memory_space<vmem>>, vector<8x32xf32>,
    %c0_195 = arith.constant 0 : index
    %c0_196 = arith.constant 0 : index
    %333 = vector.load %arg12[%c0_195, %c0_196] : memref<32x32xf32, #tpu.memory_space<vmem>>, vector<32x32xf32>
    %c0_197 = arith.constant 0 : index
    %c0_198 = arith.constant 0 : index
    %334 = vector.load %arg7[%c0_197, %c0_198] : memref<32x128xf32, #tpu.memory_space<vmem>>, vector<32x128xf32>
    %cst_199 = arith.constant dense<0.000000e+00> : vector<32x128xf32>
    %335 = tpu.matmul %333, %334, %cst_199 {dimension_numbers = #tpu.dot_dimension_numbers<[1], [0], [0], [1], [0, 0, 1, 1], [], []>} : vector<32x32xf32>, vector<32x128xf32>, vector<32x128xf32> -> vector<32x128xf32>
    %c0_200 = arith.constant 0 : index
    %c0_201 = arith.constant 0 : index
    %336 = vector.load %arg8[%c0_200, %c0_201] : memref<1x128xf32, #tpu.memory_space<vmem>>, vector<1x128xf32>
    %337 = vector.broadcast %336 : vector<1x128xf32> to vector<32x128xf32>
    %338 = arith.addf %335, %337 : vector<32x128xf32>
    %c0_202 = arith.constant 0 : index
    %c0_203 = arith.constant 0 : index
    %339 = vector.load %arg9[%c0_202, %c0_203] : memref<32x128xf32, #tpu.memory_space<vmem>>, vector<32x128xf32>
    tpu.vector_store %arg9[%c0_202, %c0_203], %338 {strides = array<i32>} : memref<32x128xf32, #tpu.memory_space<vmem>>, vector<32x128xf32>,
    return
  }
}

</mosaic_0001>

<llo_original>
// kernel: resnet_decoder_forward.1
$region0: #{resnet_decoder_forward.1}
  #allocation0 [shape = 'u32[]', space=smem, size = 0x4, offset = 0x4, fixed_abs, tag = 'smem constant byte address 0x4 - core index']
  #allocation1 [shape = 'u32[144,128]{1,0:T(1,128)}', space=vmem, size = 0x12000, scoped, tag = 'internal scratch']
  #allocation2 [shape = 'f32[32,32]{1,0:T(8,128)}', space=vmem, size = 0x4000, scoped, tag = 'scratch operand']
  #allocation3 [shape = 'f32[32,128]{1,0:T(8,128)}', space=vmem, size = 0x4000, scoped, tag = 'scratch operand']
  #allocation4 [shape = 'f32[32,32]{1,0:T(8,128)}', space=vmem, size = 0x4000, scoped, tag = 'scratch operand']
  %s0 = inlined_call_operand.vmem [shape: s32[4,8], index: 0, kind: input, shape index: {}]
  %s1 = inlined_call_operand.vmem [shape: f32[4,32], index: 1, kind: input, shape index: {}]
  %s2 = inlined_call_operand.vmem [shape: f32[50,1,32], index: 2, kind: input, shape index: {}]
  %s3 = inlined_call_operand.vmem [shape: f32[32,128], index: 3, kind: input, shape index: {}]
  %s4 = inlined_call_operand.vmem [shape: f32[1,128], index: 4, kind: input, shape index: {}]
  %s5 = inlined_call_operand.hbm [shape: f32[64,256], index: 5, kind: input, shape index: {}]
  %s6 = inlined_call_operand.vmem [shape: f32[1,128], index: 6, kind: input, shape index: {}]
  %s7 = inlined_call_operand.vmem [shape: f32[32,128], index: 7, kind: input, shape index: {}]
  %s8 = inlined_call_operand.vmem [shape: f32[1,128], index: 8, kind: input, shape index: {}]
  %s9 = inlined_call_operand.vmem [shape: f32[32,128], index: 9, kind: output, shape index: {}]
  %s10 = sld [smem:[#allocation0]]
  $region54: #{resnet_decoder_forward.1} parent=0
    _
  %s12 = ssub.s32 1, %s10
  %s13 = scalar_select 0, %s12, %s10
  $region1: #{resnet_decoder_forward.1} parent=0
    #allocation5 [shape = 'u8[2048]{0}', space=smem, size = 0x800, scoped, tag = 'input window, operand 0, single buffered']
    #allocation6 [shape = 's32[1]{0}', space=sflag, size = 0x4, scoped, tag = 'scoped memory for resnet_decoder_forward.1']
    #allocation7 [shape = 's32[1]{0}', space=sflag, size = 0x4, scoped, tag = 'scoped memory for resnet_decoder_forward.1']
    #allocation8 [shape = 'u8[65536]{0}', space=vmem, size = 0x10000, scoped, tag = 'input window, operand 5, single buffered']
    %14 = vsyncpa [#allocation7], 0
    %15 = vsyncpa [#allocation6], 0
    // Predicated region
    $region2: #{resnet_decoder_forward.1} parent=1 // pred_check
      _
    $region3: #{resnet_decoder_forward.1} parent=1 // pred_check_branch
      %17 = sbr.rel (0) target = $region5
    $region4: #{resnet_decoder_forward.1} parent=1 // pred_region
      %s19 = ssub.s32 64, 64
      %20 = vsyncadd [#allocation7], %s19
      %s22 = sshll.u32 %s0, 4
      %s23 = int_to_ptr.vmem [resolvable:$true] %s22
      %25 = dma.vmem_to_smem %s23, 64, [#allocation5], [#allocation7]
    $region5: #{resnet_decoder_forward.1} parent=1 // pred_fallthru
      _
    // Predicated region
    $region6: #{resnet_decoder_forward.1} parent=1 // pred_check
      _
    $region7: #{resnet_decoder_forward.1} parent=1 // pred_check_branch
      %27 = sbr.rel (0) target = $region9
    $region8: #{resnet_decoder_forward.1} parent=1 // pred_region
      _
    $region9: #{resnet_decoder_forward.1} parent=1 // pred_fallthru
      _
    // Predicated region
    $region10: #{resnet_decoder_forward.1} parent=1 // pred_check
      _
    $region11: #{resnet_decoder_forward.1} parent=1 // pred_check_branch
      %29 = sbr.rel (0) target = $region13
    $region12: #{resnet_decoder_forward.1} parent=1 // pred_region
      _
    $region13: #{resnet_decoder_forward.1} parent=1 // pred_fallthru
      _
    // Predicated region
    $region14: #{resnet_decoder_forward.1} parent=1 // pred_check
      _
    $region15: #{resnet_decoder_forward.1} parent=1 // pred_check_branch
      %31 = sbr.rel (0) target = $region17
    $region16: #{resnet_decoder_forward.1} parent=1 // pred_region
      _
    $region17: #{resnet_decoder_forward.1} parent=1 // pred_fallthru
      _
    // Predicated region
    $region18: #{resnet_decoder_forward.1} parent=1 // pred_check
      _
    $region19: #{resnet_decoder_forward.1} parent=1 // pred_check_branch
      %33 = sbr.rel (0) target = $region21
    $region20: #{resnet_decoder_forward.1} parent=1 // pred_region
      _
    $region21: #{resnet_decoder_forward.1} parent=1 // pred_fallthru
      _
    // Predicated region
    $region22: #{resnet_decoder_forward.1} parent=1 // pred_check
      _
    $region23: #{resnet_decoder_forward.1} parent=1 // pred_check_branch
      %35 = sbr.rel (0) target = $region25
    $region24: #{resnet_decoder_forward.1} parent=1 // pred_region
      %s37 = ssub.s32 2048, 2048
      %38 = vsyncadd [#allocation6], %s37
      %s39 = sshll.u32 [#allocation8], 4
      %s40 = int_to_ptr.vmem [resolvable:$true] %s39
      %45 = dma.hbm_to_vmem [thread:$0]  %s5, 2048, %s40, [#allocation6], 256, 256, 16
    $region25: #{resnet_decoder_forward.1} parent=1 // pred_fallthru
      _
    // Predicated region
    $region26: #{resnet_decoder_forward.1} parent=1 // pred_check
      _
    $region27: #{resnet_decoder_forward.1} parent=1 // pred_check_branch
      %47 = sbr.rel (0) target = $region29
    $region28: #{resnet_decoder_forward.1} parent=1 // pred_region
      _
    $region29: #{resnet_decoder_forward.1} parent=1 // pred_fallthru
      _
    // Predicated region
    $region30: #{resnet_decoder_forward.1} parent=1 // pred_check
      _
    $region31: #{resnet_decoder_forward.1} parent=1 // pred_check_branch
      %49 = sbr.rel (0) target = $region33
    $region32: #{resnet_decoder_forward.1} parent=1 // pred_region
      _
    $region33: #{resnet_decoder_forward.1} parent=1 // pred_fallthru
      _
    // Predicated region
    $region34: #{resnet_decoder_forward.1} parent=1 // pred_check
      _
    $region35: #{resnet_decoder_forward.1} parent=1 // pred_check_branch
      %51 = sbr.rel (0) target = $region37
    $region36: #{resnet_decoder_forward.1} parent=1 // pred_region
      _
    $region37: #{resnet_decoder_forward.1} parent=1 // pred_fallthru
      _
    // Predicated region
    $region38: #{resnet_decoder_forward.1} parent=1 // pred_check
      _
    $region39: #{resnet_decoder_forward.1} parent=1 // pred_check_branch
      %53 = sbr.rel (0) target = $region41
    $region40: #{resnet_decoder_forward.1} parent=1 // pred_region
      %54 = dma.done [#allocation7], 64
    $region41: #{resnet_decoder_forward.1} parent=1 // pred_fallthru
      _
    // Predicated region
    $region42: #{resnet_decoder_forward.1} parent=1 // pred_check
      _
    $region43: #{resnet_decoder_forward.1} parent=1 // pred_check_branch
      %56 = sbr.rel (0) target = $region45
    $region44: #{resnet_decoder_forward.1} parent=1 // pred_region
      %57 = dma.done [#allocation6], 2048
    $region45: #{resnet_decoder_forward.1} parent=1 // pred_fallthru
      _
    %58 = sfence
    %v59 = vld [vmem:[%s1] sm:$0x1]
    %vm60 = vcmask 253952
    %61 = vst.msk [vmem:[#allocation2] sm:$0x1] %vm60, %v59
    %s62 = sld [smem:[#allocation5]]
    %s63 = scalar_lea.vmem %s2, %s62
    %v64 = vld [vmem:[%s63] sm:$0x1]
    %65 = vst.msk [vmem:[#allocation2 + $0x1] sm:$0x1] %vm60, %v64
    %s66 = sld [smem:[#allocation5 + $0x1]]
    %s67 = scalar_lea.vmem %s2, %s66
    %v68 = vld [vmem:[%s67] sm:$0x1]
    %69 = vst.msk [vmem:[#allocation2 + $0x2] sm:$0x1] %vm60, %v68
    %s70 = sld [smem:[#allocation5 + $0x2]]
    %s71 = scalar_lea.vmem %s2, %s70
    %v72 = vld [vmem:[%s71] sm:$0x1]
    %73 = vst.msk [vmem:[#allocation2 + $0x3] sm:$0x1] %vm60, %v72
    %s74 = sld [smem:[#allocation5 + $0x3]]
    %s75 = scalar_lea.vmem %s2, %s74
    %v76 = vld [vmem:[%s75] sm:$0x1]
    %77 = vst.msk [vmem:[#allocation2 + $0x4] sm:$0x1] %vm60, %v76
    %s78 = sld [smem:[#allocation5 + $0x4]]
    %s79 = scalar_lea.vmem %s2, %s78
    %v80 = vld [vmem:[%s79] sm:$0x1]
    %81 = vst.msk [vmem:[#allocation2 + $0x5] sm:$0x1] %vm60, %v80
    %s82 = sld [smem:[#allocation5 + $0x5]]
    %s83 = scalar_lea.vmem %s2, %s82
    %v84 = vld [vmem:[%s83] sm:$0x1]
    %85 = vst.msk [vmem:[#allocation2 + $0x6] sm:$0x1] %vm60, %v84
    %s86 = sld [smem:[#allocation5 + $0x6]]
    %s87 = scalar_lea.vmem %s2, %s86
    %v88 = vld [vmem:[%s87] sm:$0x1]
    %89 = vst.msk [vmem:[#allocation2 + $0x7] sm:$0x1] %vm60, %v88
    %v90 = vld [vmem:[%s1 + $0x1] sm:$0x1]
    %91 = vst.msk [vmem:[#allocation2 + $0x8] sm:$0x1] %vm60, %v90
    %s92 = sld [smem:[#allocation5 + $0x80]]
    %s93 = scalar_lea.vmem %s2, %s92
    %v94 = vld [vmem:[%s93] sm:$0x1]
    %95 = vst.msk [vmem:[#allocation2 + $0x9] sm:$0x1] %vm60, %v94
    %s96 = sld [smem:[#allocation5 + $0x81]]
    %s97 = scalar_lea.vmem %s2, %s96
    %v98 = vld [vmem:[%s97] sm:$0x1]
    %99 = vst.msk [vmem:[#allocation2 + $0xa] sm:$0x1] %vm60, %v98
    %s100 = sld [smem:[#allocation5 + $0x82]]
    %s101 = scalar_lea.vmem %s2, %s100
    %v102 = vld [vmem:[%s101] sm:$0x1]
    %103 = vst.msk [vmem:[#allocation2 + $0xb] sm:$0x1] %vm60, %v102
    %s104 = sld [smem:[#allocation5 + $0x83]]
    %s105 = scalar_lea.vmem %s2, %s104
    %v106 = vld [vmem:[%s105] sm:$0x1]
    %107 = vst.msk [vmem:[#allocation2 + $0xc] sm:$0x1] %vm60, %v106
    %s108 = sld [smem:[#allocation5 + $0x84]]
    %s109 = scalar_lea.vmem %s2, %s108
    %v110 = vld [vmem:[%s109] sm:$0x1]
    %111 = vst.msk [vmem:[#allocation2 + $0xd] sm:$0x1] %vm60, %v110
    %s112 = sld [smem:[#allocation5 + $0x85]]
    %s113 = scalar_lea.vmem %s2, %s112
    %v114 = vld [vmem:[%s113] sm:$0x1]
    %115 = vst.msk [vmem:[#allocation2 + $0xe] sm:$0x1] %vm60, %v114
    %s116 = sld [smem:[#allocation5 + $0x86]]
    %s117 = scalar_lea.vmem %s2, %s116
    %v118 = vld [vmem:[%s117] sm:$0x1]
    %119 = vst.msk [vmem:[#allocation2 + $0xf] sm:$0x1] %vm60, %v118
    %v120 = vld [vmem:[%s1 + $0x2] sm:$0x1]
    %121 = vst.msk [vmem:[#allocation2 + $0x10] sm:$0x1] %vm60, %v120
    %s122 = sld [smem:[#allocation5 + $0x100]]
    %s123 = scalar_lea.vmem %s2, %s122
    %v124 = vld [vmem:[%s123] sm:$0x1]
    %125 = vst.msk [vmem:[#allocation2 + $0x11] sm:$0x1] %vm60, %v124
    %s126 = sld [smem:[#allocation5 + $0x101]]
    %s127 = scalar_lea.vmem %s2, %s126
    %v128 = vld [vmem:[%s127] sm:$0x1]
    %129 = vst.msk [vmem:[#allocation2 + $0x12] sm:$0x1] %vm60, %v128
    %s130 = sld [smem:[#allocation5 + $0x102]]
    %s131 = scalar_lea.vmem %s2, %s130
    %v132 = vld [vmem:[%s131] sm:$0x1]
    %133 = vst.msk [vmem:[#allocation2 + $0x13] sm:$0x1] %vm60, %v132
    %s134 = sld [smem:[#allocation5 + $0x103]]
    %s135 = scalar_lea.vmem %s2, %s134
    %v136 = vld [vmem:[%s135] sm:$0x1]
    %137 = vst.msk [vmem:[#allocation2 + $0x14] sm:$0x1] %vm60, %v136
    %s138 = sld [smem:[#allocation5 + $0x104]]
    %s139 = scalar_lea.vmem %s2, %s138
    %v140 = vld [vmem:[%s139] sm:$0x1]
    %141 = vst.msk [vmem:[#allocation2 + $0x15] sm:$0x1] %vm60, %v140
    %s142 = sld [smem:[#allocation5 + $0x105]]
    %s143 = scalar_lea.vmem %s2, %s142
    %v144 = vld [vmem:[%s143] sm:$0x1]
    %145 = vst.msk [vmem:[#allocation2 + $0x16] sm:$0x1] %vm60, %v144
    %s146 = sld [smem:[#allocation5 + $0x106]]
    %s147 = scalar_lea.vmem %s2, %s146
    %v148 = vld [vmem:[%s147] sm:$0x1]
    %149 = vst.msk [vmem:[#allocation2 + $0x17] sm:$0x1] %vm60, %v148
    %v150 = vld [vmem:[%s1 + $0x3] sm:$0x1]
    %151 = vst.msk [vmem:[#allocation2 + $0x18] sm:$0x1] %vm60, %v150
    %s152 = sld [smem:[#allocation5 + $0x180]]
    %s153 = scalar_lea.vmem %s2, %s152
    %v154 = vld [vmem:[%s153] sm:$0x1]
    %155 = vst.msk [vmem:[#allocation2 + $0x19] sm:$0x1] %vm60, %v154
    %s156 = sld [smem:[#allocation5 + $0x181]]
    %s157 = scalar_lea.vmem %s2, %s156
    %v158 = vld [vmem:[%s157] sm:$0x1]
    %159 = vst.msk [vmem:[#allocation2 + $0x1a] sm:$0x1] %vm60, %v158
    %s160 = sld [smem:[#allocation5 + $0x182]]
    %s161 = scalar_lea.vmem %s2, %s160
    %v162 = vld [vmem:[%s161] sm:$0x1]
    %163 = vst.msk [vmem:[#allocation2 + $0x1b] sm:$0x1] %vm60, %v162
    %s164 = sld [smem:[#allocation5 + $0x183]]
    %s165 = scalar_lea.vmem %s2, %s164
    %v166 = vld [vmem:[%s165] sm:$0x1]
    %167 = vst.msk [vmem:[#allocation2 + $0x1c] sm:$0x1] %vm60, %v166
    %s168 = sld [smem:[#allocation5 + $0x184]]
    %s169 = scalar_lea.vmem %s2, %s168
    %v170 = vld [vmem:[%s169] sm:$0x1]
    %171 = vst.msk [vmem:[#allocation2 + $0x1d] sm:$0x1] %vm60, %v170
    %s172 = sld [smem:[#allocation5 + $0x185]]
    %s173 = scalar_lea.vmem %s2, %s172
    %v174 = vld [vmem:[%s173] sm:$0x1]
    %175 = vst.msk [vmem:[#allocation2 + $0x1e] sm:$0x1] %vm60, %v174
    %s176 = sld [smem:[#allocation5 + $0x186]]
    %s177 = scalar_lea.vmem %s2, %s176
    %v178 = vld [vmem:[%s177] sm:$0x1]
    %179 = vst.msk [vmem:[#allocation2 + $0x1f] sm:$0x1] %vm60, %v178
    %v180 = vld [vmem:[#allocation2] sm:$0xff]
    %v181 = vld [vmem:[#allocation2 + $0x8] sm:$0xff]
    %v182 = vld [vmem:[#allocation2 + $0x10] sm:$0xff]
    %v183 = vld [vmem:[#allocation2 + $0x18] sm:$0xff]
    %v184 = vld [vmem:[%s3] sm:$0xff]
    %v185 = vld [vmem:[%s3 + $0x8] sm:$0xff]
    %v186 = vld [vmem:[%s3 + $0x10] sm:$0xff]
    %v187 = vld [vmem:[%s3 + $0x18] sm:$0xff]
    %v188 = vld [vmem:[%s4] sm:$0x1]
    %v190 = vlaneseq
    %v191 = vshrl.u32 %v190, 7
    %v192 = vsub.s32 0, %v191
    %v193 = vrot.slane %v188, %v192
    %vm195 = vcmask 261120
    %v197 = vsel %vm195, %v180, 0
    %v200 = vsel %vm195, %v181, 0
    %v203 = vsel %vm195, %v182, 0
    %v206 = vsel %vm195, %v183, 0
    %208 = vmatprep.subr.mxu0 0.0
    %209 = vmatpush1.msra.mxu0 %v184
    %210 = vmatprep.subr.mxu0 0.0
    %211 = vmatpush1.msra.mxu0 %v185
    %212 = vmatprep.subr.mxu0 0.0
    %213 = vmatpush1.msra.mxu0 %v186
    %214 = vmatprep.subr.mxu0 0.0
    %215 = vmatpush1.msra.mxu0 %v187
    %216 = vmatprep.subr.mxu0 0.0
    %217 = vmatpush1.msra.mxu0 0.0
    %218 = vmatprep.subr.mxu0 0.0
    %219 = vmatpush1.msra.mxu0 0.0
    %220 = vmatprep.subr.mxu0 0.0
    %221 = vmatpush1.msra.mxu0 0.0
    %222 = vmatprep.subr.mxu0 0.0
    %223 = vmatpush1.msra.mxu0 0.0
    %224 = vmatprep.subr.mxu0 0.0
    %225 = vmatpush1.msra.mxu0 0.0
    %226 = vmatprep.subr.mxu0 0.0
    %227 = vmatpush1.msra.mxu0 0.0
    %228 = vmatprep.subr.mxu0 0.0
    %229 = vmatpush1.msra.mxu0 0.0
    %230 = vmatprep.subr.mxu0 0.0
    %231 = vmatpush1.msra.mxu0 0.0
    %232 = vmatprep.subr.mxu0 0.0
    %233 = vmatpush1.msra.mxu0 0.0
    %234 = vmatprep.subr.mxu0 0.0
    %235 = vmatpush1.msra.mxu0 0.0
    %236 = vmatprep.subr.mxu0 0.0
    %237 = vmatpush1.msra.mxu0 0.0
    %238 = vmatprep.subr.mxu0 0.0
    %239 = vmatpush1.msra.mxu0 0.0
    %240 = vmatprep.subr.mxu0 0.0
    %241 = vmatpush1.msra.mxu0 0.0
    %242 = vmatprep.subr.mxu0 0.0
    %243 = vmatpush1.msra.mxu0 0.0
    %244 = vmatprep.subr.mxu0 0.0
    %245 = vmatpush1.msra.mxu0 0.0
    %246 = vmatprep.subr.mxu0 0.0
    %247 = vmatpush1.msra.mxu0 0.0
    %248 = vmatprep.subr.mxu0 0.0
    %249 = vmatpush1.msra.mxu0 0.0
    %250 = vmatprep.subr.mxu0 0.0
    %251 = vmatpush1.msra.mxu0 0.0
    %252 = vmatprep.subr.mxu0 0.0
    %253 = vmatpush1.msra.mxu0 0.0
    %254 = vmatprep.subr.mxu0 0.0
    %255 = vmatpush1.msra.mxu0 0.0
    %256 = vmatprep.subr.mxu0 0.0
    %257 = vmatpush1.msra.mxu0 0.0
    %258 = vmatprep.subr.mxu0 0.0
    %259 = vmatpush1.msra.mxu0 0.0
    %260 = vmatprep.subr.mxu0 0.0
    %261 = vmatpush1.msra.mxu0 0.0
    %262 = vmatprep.subr.mxu0 0.0
    %263 = vmatpush1.msra.mxu0 0.0
    %264 = vmatprep.subr.mxu0 0.0
    %265 = vmatpush1.msra.mxu0 0.0
    %266 = vmatprep.subr.mxu0 0.0
    %267 = vmatpush1.msra.mxu0 0.0
    %268 = vmatprep.subr.mxu0 0.0
    %269 = vmatpush1.msra.mxu0 0.0
    %270 = vmatprep.subr.mxu0 0.0
    %271 = vmatpush1.msra.mxu0 0.0
    %272 = vmatprep.mubr.f32.mxu0 0.0
    %273 = vmatmul.mubr.f32.gmra.mrb[0].mxu0 %v197
    %v274 = vpop.f32.mrb[0].mxu0
    %v275 = vadd.f32 %v193, %v274
    %v276 = vpop.f32.mrb[0].mxu0
    %277 = vmatprep.mubr.f32.mxu0 0.0
    %278 = vmatmul.mubr.f32.gmra.mrb[0].mxu0 %v200
    %v279 = vpop.f32.mrb[0].mxu0
    %v280 = vadd.f32 %v193, %v279
    %v281 = vpop.f32.mrb[0].mxu0
    %282 = vmatprep.mubr.f32.mxu0 0.0
    %283 = vmatmul.mubr.f32.gmra.mrb[0].mxu0 %v203
    %v284 = vpop.f32.mrb[0].mxu0
    %v285 = vadd.f32 %v193, %v284
    %v286 = vpop.f32.mrb[0].mxu0
    %287 = vmatprep.mubr.f32.mxu0 0.0
    %288 = vmatmul.mubr.f32.gmra.mrb[0].mxu0 %v206
    %v289 = vpop.f32.mrb[0].mxu0
    %v290 = vadd.f32 %v193, %v289
    %v291 = vpop.f32.mrb[0].mxu0
    %292 = vdwg.mxu0
    %293 = vst [vmem:[#allocation3] sm:$0xff] %v275
    %294 = vst [vmem:[#allocation3 + $0x8] sm:$0xff] %v280
    %295 = vst [vmem:[#allocation3 + $0x10] sm:$0xff] %v285
    %296 = vst [vmem:[#allocation3 + $0x18] sm:$0xff] %v290
    %v297 = vld [vmem:[#allocation8] sm:$0xff]
    %v298 = vld [vmem:[#allocation8 + $0x8] sm:$0xff]
    %v299 = vld [vmem:[#allocation8 + $0x10] sm:$0xff]
    %v300 = vld [vmem:[#allocation8 + $0x18] sm:$0xff]
    %v301 = vld [vmem:[#allocation8 + $0x20] sm:$0xff]
    %v302 = vld [vmem:[#allocation8 + $0x28] sm:$0xff]
    %v303 = vld [vmem:[#allocation8 + $0x30] sm:$0xff]
    %v304 = vld [vmem:[#allocation8 + $0x38] sm:$0xff]
    %v305 = vld [vmem:[#allocation8 + $0x40] sm:$0xff]
    %v306 = vld [vmem:[#allocation8 + $0x48] sm:$0xff]
    %v307 = vld [vmem:[#allocation8 + $0x50] sm:$0xff]
    %v308 = vld [vmem:[#allocation8 + $0x58] sm:$0xff]
    %v309 = vld [vmem:[#allocation8 + $0x60] sm:$0xff]
    %v310 = vld [vmem:[#allocation8 + $0x68] sm:$0xff]
    %v311 = vld [vmem:[#allocation8 + $0x70] sm:$0xff]
    %v312 = vld [vmem:[#allocation8 + $0x78] sm:$0xff]
    %v313 = vld [vmem:[%s6] sm:$0x1]
    %v314 = vld [vmem:[#allocation3] sm:$0xff]
    %v315 = vxor.u32 %v314, 2147483648
    %v316 = vmul.f32 %v315, 1.442695
    %v317 = vpow.pop %v316
    %v318 = vadd.f32 %v317, 1.0
    %v319 = vrcp.pop %v318
    %v320 = vmul.f32 1.0, %v319
    %v321 = vtanh.pop %v314
    %v322 = vmul.f32 %v320, 0.0
    %324 = vrot.lane.b32.xlu0 %v321, 64
    %v325 = vpop.permute.xlu0 %324
    %v327 = vmul.f32 %v320, %v325
    %329 = vrot.lane.b32.xlu0 %v327, 32
    %v330 = vpop.permute.xlu0 %329
    %v332 = vadd.f32 %v322, %v330
    %v333 = vtanh.pop %v332
    %335 = vrot.lane.b32.xlu0 %v333, 64
    %v336 = vpop.permute.xlu0 %335
    %v338 = vmul.f32 %v320, %v336
    %340 = vrot.lane.b32.xlu0 %v338, 32
    %v341 = vpop.permute.xlu0 %340
    %v343 = vsel %vm195, %v341, 0.0
    %vm344 = vcmask 523264
    %v346 = vsel %vm344, %v343, 0
    %348 = vmatprep.subr.mxu0 %v298
    %349 = vmatpush1.msra.mxu0 %v297
    %350 = vmatprep.subr.mxu0 %v300
    %351 = vmatpush1.msra.mxu0 %v299
    %352 = vmatprep.subr.mxu0 %v302
    %353 = vmatpush1.msra.mxu0 %v301
    %354 = vmatprep.subr.mxu0 %v304
    %355 = vmatpush1.msra.mxu0 %v303
    %356 = vmatprep.subr.mxu0 %v306
    %357 = vmatpush1.msra.mxu0 %v305
    %358 = vmatprep.subr.mxu0 %v308
    %359 = vmatpush1.msra.mxu0 %v307
    %360 = vmatprep.subr.mxu0 %v310
    %361 = vmatpush1.msra.mxu0 %v309
    %362 = vmatprep.subr.mxu0 %v312
    %363 = vmatpush1.msra.mxu0 %v311
    %364 = vmatprep.subr.mxu0 0.0
    %365 = vmatpush1.msra.mxu0 0.0
    %366 = vmatprep.subr.mxu0 0.0
    %367 = vmatpush1.msra.mxu0 0.0
    %368 = vmatprep.subr.mxu0 0.0
    %369 = vmatpush1.msra.mxu0 0.0
    %370 = vmatprep.subr.mxu0 0.0
    %371 = vmatpush1.msra.mxu0 0.0
    %372 = vmatprep.subr.mxu0 0.0
    %373 = vmatpush1.msra.mxu0 0.0
    %374 = vmatprep.subr.mxu0 0.0
    %375 = vmatpush1.msra.mxu0 0.0
    %376 = vmatprep.subr.mxu0 0.0
    %377 = vmatpush1.msra.mxu0 0.0
    %378 = vmatprep.subr.mxu0 0.0
    %379 = vmatpush1.msra.mxu0 0.0
    %380 = vmatprep.subr.mxu0 0.0
    %381 = vmatpush1.msra.mxu0 0.0
    %382 = vmatprep.subr.mxu0 0.0
    %383 = vmatpush1.msra.mxu0 0.0
    %384 = vmatprep.subr.mxu0 0.0
    %385 = vmatpush1.msra.mxu0 0.0
    %386 = vmatprep.subr.mxu0 0.0
    %387 = vmatpush1.msra.mxu0 0.0
    %388 = vmatprep.subr.mxu0 0.0
    %389 = vmatpush1.msra.mxu0 0.0
    %390 = vmatprep.subr.mxu0 0.0
    %391 = vmatpush1.msra.mxu0 0.0
    %392 = vmatprep.subr.mxu0 0.0
    %393 = vmatpush1.msra.mxu0 0.0
    %394 = vmatprep.subr.mxu0 0.0
    %395 = vmatpush1.msra.mxu0 0.0
    %396 = vmatprep.subr.mxu0 0.0
    %397 = vmatpush1.msra.mxu0 0.0
    %398 = vmatprep.subr.mxu0 0.0
    %399 = vmatpush1.msra.mxu0 0.0
    %400 = vmatprep.subr.mxu0 0.0
    %401 = vmatpush1.msra.mxu0 0.0
    %402 = vmatprep.subr.mxu0 0.0
    %403 = vmatpush1.msra.mxu0 0.0
    %404 = vmatprep.subr.mxu0 0.0
    %405 = vmatpush1.msra.mxu0 0.0
    %406 = vmatprep.subr.mxu0 0.0
    %407 = vmatpush1.msra.mxu0 0.0
    %408 = vmatprep.subr.mxu0 0.0
    %409 = vmatpush1.msra.mxu0 0.0
    %410 = vmatprep.subr.mxu0 0.0
    %411 = vmatpush1.msra.mxu0 0.0
    %412 = vmatprep.mubr.f32.mxu0 0.0
    %413 = vmatmul.mubr.f32.gmra.mrb[0].mxu0 %v346
    %v414 = vpop.f32.mrb[0].mxu0
    %v415 = vadd.f32 0.0, %v414
    %v416 = vpop.f32.mrb[0].mxu0
    %v417 = vadd.f32 0.0, %v416
    %418 = vdwg.mxu0
    %s419 = scalar_lea.vmem [#allocation3], 8
    %v420 = vld [vmem:[%s419] sm:$0xff]
    %v421 = vadd.f32 %v420, %v415
    %v422 = vxor.u32 %v421, 2147483648
    %v423 = vmul.f32 %v422, 1.442695
    %v424 = vpow.pop %v423
    %v425 = vadd.f32 %v424, 1.0
    %v426 = vrcp.pop %v425
    %v427 = vmul.f32 1.0, %v426
    %v428 = vtanh.pop %v421
    %v429 = vmul.f32 %v427, %v332
    %431 = vrot.lane.b32.xlu0 %v428, 64
    %v432 = vpop.permute.xlu0 %431
    %v434 = vmul.f32 %v427, %v432
    %436 = vrot.lane.b32.xlu0 %v434, 32
    %v437 = vpop.permute.xlu0 %436
    %v439 = vadd.f32 %v429, %v437
    %v440 = vtanh.pop %v439
    %442 = vrot.lane.b32.xlu0 %v440, 64
    %v443 = vpop.permute.xlu0 %442
    %v445 = vmul.f32 %v427, %v443
    %v447 = vlaneseq
    %v448 = vshrl.u32 %v447, 7
    %v449 = vsub.s32 0, %v448
    %v450 = vrot.slane %v313, %v449
    %v452 = vadd.f32 %v417, %v450
    %v453 = vxor.u32 %v452, 2147483648
    %v454 = vmul.f32 %v453, 1.442695
    %v455 = vpow.pop %v454
    %v456 = vadd.f32 %v455, 1.0
    %v457 = vrcp.pop %v456
    %v458 = vmul.f32 1.0, %v457
    %v459 = vtanh.pop %v452
    %v460 = vmul.f32 %v458, 0.0
    %462 = vrot.lane.b32.xlu0 %v459, 64
    %v463 = vpop.permute.xlu0 %462
    %v465 = vmul.f32 %v458, %v463
    %467 = vrot.lane.b32.xlu0 %v465, 32
    %v468 = vpop.permute.xlu0 %467
    %v470 = vadd.f32 %v460, %v468
    %v471 = vtanh.pop %v470
    %473 = vrot.lane.b32.xlu0 %v471, 64
    %v474 = vpop.permute.xlu0 %473
    %v476 = vmul.f32 %v458, %v474
    %478 = vrot.lane.b32.xlu0 %v476, 32
    %v479 = vpop.permute.xlu0 %478
    %481 = vst.msk [vmem:[#allocation4] sm:$0xff] %vm195, %v479
    %483 = vrot.lane.b32.xlu0 %v445, 32
    %v484 = vpop.permute.xlu0 %483
    %486 = vrot.lane.b32.xlu0 %v476, 64
    %v487 = vpop.permute.xlu0 %486
    %v489 = vsel %vm195, %v484, %v487
    %v491 = vsel %vm344, %v489, 0
    %493 = vmatprep.subr.mxu0 %v298
    %494 = vmatpush1.msra.mxu0 %v297
    %495 = vmatprep.subr.mxu0 %v300
    %496 = vmatpush1.msra.mxu0 %v299
    %497 = vmatprep.subr.mxu0 %v302
    %498 = vmatpush1.msra.mxu0 %v301
    %499 = vmatprep.subr.mxu0 %v304
    %500 = vmatpush1.msra.mxu0 %v303
    %501 = vmatprep.subr.mxu0 %v306
    %502 = vmatpush1.msra.mxu0 %v305
    %503 = vmatprep.subr.mxu0 %v308
    %504 = vmatpush1.msra.mxu0 %v307
    %505 = vmatprep.subr.mxu0 %v310
    %506 = vmatpush1.msra.mxu0 %v309
    %507 = vmatprep.subr.mxu0 %v312
    %508 = vmatpush1.msra.mxu0 %v311
    %509 = vmatprep.subr.mxu0 0.0
    %510 = vmatpush1.msra.mxu0 0.0
    %511 = vmatprep.subr.mxu0 0.0
    %512 = vmatpush1.msra.mxu0 0.0
    %513 = vmatprep.subr.mxu0 0.0
    %514 = vmatpush1.msra.mxu0 0.0
    %515 = vmatprep.subr.mxu0 0.0
    %516 = vmatpush1.msra.mxu0 0.0
    %517 = vmatprep.subr.mxu0 0.0
    %518 = vmatpush1.msra.mxu0 0.0
    %519 = vmatprep.subr.mxu0 0.0
    %520 = vmatpush1.msra.mxu0 0.0
    %521 = vmatprep.subr.mxu0 0.0
    %522 = vmatpush1.msra.mxu0 0.0
    %523 = vmatprep.subr.mxu0 0.0
    %524 = vmatpush1.msra.mxu0 0.0
    %525 = vmatprep.subr.mxu0 0.0
    %526 = vmatpush1.msra.mxu0 0.0
    %527 = vmatprep.subr.mxu0 0.0
    %528 = vmatpush1.msra.mxu0 0.0
    %529 = vmatprep.subr.mxu0 0.0
    %530 = vmatpush1.msra.mxu0 0.0
    %531 = vmatprep.subr.mxu0 0.0
    %532 = vmatpush1.msra.mxu0 0.0
    %533 = vmatprep.subr.mxu0 0.0
    %534 = vmatpush1.msra.mxu0 0.0
    %535 = vmatprep.subr.mxu0 0.0
    %536 = vmatpush1.msra.mxu0 0.0
    %537 = vmatprep.subr.mxu0 0.0
    %538 = vmatpush1.msra.mxu0 0.0
    %539 = vmatprep.subr.mxu0 0.0
    %540 = vmatpush1.msra.mxu0 0.0
    %541 = vmatprep.subr.mxu0 0.0
    %542 = vmatpush1.msra.mxu0 0.0
    %543 = vmatprep.subr.mxu0 0.0
    %544 = vmatpush1.msra.mxu0 0.0
    %545 = vmatprep.subr.mxu0 0.0
    %546 = vmatpush1.msra.mxu0 0.0
    %547 = vmatprep.subr.mxu0 0.0
    %548 = vmatpush1.msra.mxu0 0.0
    %549 = vmatprep.subr.mxu0 0.0
    %550 = vmatpush1.msra.mxu0 0.0
    %551 = vmatprep.subr.mxu0 0.0
    %552 = vmatpush1.msra.mxu0 0.0
    %553 = vmatprep.subr.mxu0 0.0
    %554 = vmatpush1.msra.mxu0 0.0
    %555 = vmatprep.subr.mxu0 0.0
    %556 = vmatpush1.msra.mxu0 0.0
    %557 = vmatprep.mubr.f32.mxu0 0.0
    %558 = vmatmul.mubr.f32.gmra.mrb[0].mxu0 %v491
    %v559 = vpop.f32.mrb[0].mxu0
    %v560 = vadd.f32 0.0, %v559
    %v561 = vpop.f32.mrb[0].mxu0
    %v562 = vadd.f32 0.0, %v561
    %563 = vdwg.mxu0
    %s564 = scalar_lea.vmem [#allocation3], 16
    %v565 = vld [vmem:[%s564] sm:$0xff]
    %v566 = vadd.f32 %v565, %v560
    %v567 = vxor.u32 %v566, 2147483648
    %v568 = vmul.f32 %v567, 1.442695
    %v569 = vpow.pop %v568
    %v570 = vadd.f32 %v569, 1.0
    %v571 = vrcp.pop %v570
    %v572 = vmul.f32 1.0, %v571
    %v573 = vtanh.pop %v566
    %v574 = vmul.f32 %v572, %v439
    %576 = vrot.lane.b32.xlu0 %v573, 64
    %v577 = vpop.permute.xlu0 %576
    %v579 = vmul.f32 %v572, %v577
    %581 = vrot.lane.b32.xlu0 %v579, 32
    %v582 = vpop.permute.xlu0 %581
    %v584 = vadd.f32 %v574, %v582
    %v585 = vtanh.pop %v584
    %587 = vrot.lane.b32.xlu0 %v585, 64
    %v588 = vpop.permute.xlu0 %587
    %v590 = vmul.f32 %v572, %v588
    %v591 = vadd.f32 %v562, %v450
    %v592 = vxor.u32 %v591, 2147483648
    %v593 = vmul.f32 %v592, 1.442695
    %v594 = vpow.pop %v593
    %v595 = vadd.f32 %v594, 1.0
    %v596 = vrcp.pop %v595
    %v597 = vmul.f32 1.0, %v596
    %v598 = vtanh.pop %v591
    %v599 = vmul.f32 %v597, %v470
    %601 = vrot.lane.b32.xlu0 %v598, 64
    %v602 = vpop.permute.xlu0 %601
    %v604 = vmul.f32 %v597, %v602
    %606 = vrot.lane.b32.xlu0 %v604, 32
    %v607 = vpop.permute.xlu0 %606
    %v609 = vadd.f32 %v599, %v607
    %v610 = vtanh.pop %v609
    %612 = vrot.lane.b32.xlu0 %v610, 64
    %v613 = vpop.permute.xlu0 %612
    %v615 = vmul.f32 %v597, %v613
    %617 = vrot.lane.b32.xlu0 %v615, 32
    %v618 = vpop.permute.xlu0 %617
    %s620 = scalar_lea.vmem [#allocation4], 8
    %621 = vst.msk [vmem:[%s620] sm:$0xff] %vm195, %v618
    %623 = vrot.lane.b32.xlu0 %v590, 32
    %v624 = vpop.permute.xlu0 %623
    %626 = vrot.lane.b32.xlu0 %v615, 64
    %v627 = vpop.permute.xlu0 %626
    %v629 = vsel %vm195, %v624, %v627
    %v631 = vsel %vm344, %v629, 0
    %633 = vmatprep.subr.mxu0 %v298
    %634 = vmatpush1.msra.mxu0 %v297
    %635 = vmatprep.subr.mxu0 %v300
    %636 = vmatpush1.msra.mxu0 %v299
    %637 = vmatprep.subr.mxu0 %v302
    %638 = vmatpush1.msra.mxu0 %v301
    %639 = vmatprep.subr.mxu0 %v304
    %640 = vmatpush1.msra.mxu0 %v303
    %641 = vmatprep.subr.mxu0 %v306
    %642 = vmatpush1.msra.mxu0 %v305
    %643 = vmatprep.subr.mxu0 %v308
    %644 = vmatpush1.msra.mxu0 %v307
    %645 = vmatprep.subr.mxu0 %v310
    %646 = vmatpush1.msra.mxu0 %v309
    %647 = vmatprep.subr.mxu0 %v312
    %648 = vmatpush1.msra.mxu0 %v311
    %649 = vmatprep.subr.mxu0 0.0
    %650 = vmatpush1.msra.mxu0 0.0
    %651 = vmatprep.subr.mxu0 0.0
    %652 = vmatpush1.msra.mxu0 0.0
    %653 = vmatprep.subr.mxu0 0.0
    %654 = vmatpush1.msra.mxu0 0.0
    %655 = vmatprep.subr.mxu0 0.0
    %656 = vmatpush1.msra.mxu0 0.0
    %657 = vmatprep.subr.mxu0 0.0
    %658 = vmatpush1.msra.mxu0 0.0
    %659 = vmatprep.subr.mxu0 0.0
    %660 = vmatpush1.msra.mxu0 0.0
    %661 = vmatprep.subr.mxu0 0.0
    %662 = vmatpush1.msra.mxu0 0.0
    %663 = vmatprep.subr.mxu0 0.0
    %664 = vmatpush1.msra.mxu0 0.0
    %665 = vmatprep.subr.mxu0 0.0
    %666 = vmatpush1.msra.mxu0 0.0
    %667 = vmatprep.subr.mxu0 0.0
    %668 = vmatpush1.msra.mxu0 0.0
    %669 = vmatprep.subr.mxu0 0.0
    %670 = vmatpush1.msra.mxu0 0.0
    %671 = vmatprep.subr.mxu0 0.0
    %672 = vmatpush1.msra.mxu0 0.0
    %673 = vmatprep.subr.mxu0 0.0
    %674 = vmatpush1.msra.mxu0 0.0
    %675 = vmatprep.subr.mxu0 0.0
    %676 = vmatpush1.msra.mxu0 0.0
    %677 = vmatprep.subr.mxu0 0.0
    %678 = vmatpush1.msra.mxu0 0.0
    %679 = vmatprep.subr.mxu0 0.0
    %680 = vmatpush1.msra.mxu0 0.0
    %681 = vmatprep.subr.mxu0 0.0
    %682 = vmatpush1.msra.mxu0 0.0
    %683 = vmatprep.subr.mxu0 0.0
    %684 = vmatpush1.msra.mxu0 0.0
    %685 = vmatprep.subr.mxu0 0.0
    %686 = vmatpush1.msra.mxu0 0.0
    %687 = vmatprep.subr.mxu0 0.0
    %688 = vmatpush1.msra.mxu0 0.0
    %689 = vmatprep.subr.mxu0 0.0
    %690 = vmatpush1.msra.mxu0 0.0
    %691 = vmatprep.subr.mxu0 0.0
    %692 = vmatpush1.msra.mxu0 0.0
    %693 = vmatprep.subr.mxu0 0.0
    %694 = vmatpush1.msra.mxu0 0.0
    %695 = vmatprep.subr.mxu0 0.0
    %696 = vmatpush1.msra.mxu0 0.0
    %697 = vmatprep.mubr.f32.mxu0 0.0
    %698 = vmatmul.mubr.f32.gmra.mrb[0].mxu0 %v631
    %v699 = vpop.f32.mrb[0].mxu0
    %v700 = vadd.f32 0.0, %v699
    %v701 = vpop.f32.mrb[0].mxu0
    %v702 = vadd.f32 0.0, %v701
    %703 = vdwg.mxu0
    %s704 = scalar_lea.vmem [#allocation3], 24
    %v705 = vld [vmem:[%s704] sm:$0xff]
    %v706 = vadd.f32 %v705, %v700
    %v707 = vxor.u32 %v706, 2147483648
    %v708 = vmul.f32 %v707, 1.442695
    %v709 = vpow.pop %v708
    %v710 = vadd.f32 %v709, 1.0
    %v711 = vrcp.pop %v710
    %v712 = vmul.f32 1.0, %v711
    %v713 = vtanh.pop %v706
    %v714 = vmul.f32 %v712, %v584
    %716 = vrot.lane.b32.xlu0 %v713, 64
    %v717 = vpop.permute.xlu0 %716
    %v719 = vmul.f32 %v712, %v717
    %721 = vrot.lane.b32.xlu0 %v719, 32
    %v722 = vpop.permute.xlu0 %721
    %v724 = vadd.f32 %v714, %v722
    %v725 = vtanh.pop %v724
    %727 = vrot.lane.b32.xlu0 %v725, 64
    %v728 = vpop.permute.xlu0 %727
    %v730 = vmul.f32 %v712, %v728
    %v731 = vadd.f32 %v702, %v450
    %v732 = vxor.u32 %v731, 2147483648
    %v733 = vmul.f32 %v732, 1.442695
    %v734 = vpow.pop %v733
    %v735 = vadd.f32 %v734, 1.0
    %v736 = vrcp.pop %v735
    %v737 = vmul.f32 1.0, %v736
    %v738 = vtanh.pop %v731
    %v739 = vmul.f32 %v737, %v609
    %741 = vrot.lane.b32.xlu0 %v738, 64
    %v742 = vpop.permute.xlu0 %741
    %v744 = vmul.f32 %v737, %v742
    %746 = vrot.lane.b32.xlu0 %v744, 32
    %v747 = vpop.permute.xlu0 %746
    %v749 = vadd.f32 %v739, %v747
    %v750 = vtanh.pop %v749
    %752 = vrot.lane.b32.xlu0 %v750, 64
    %v753 = vpop.permute.xlu0 %752
    %v755 = vmul.f32 %v737, %v753
    %757 = vrot.lane.b32.xlu0 %v755, 32
    %v758 = vpop.permute.xlu0 %757
    %s760 = scalar_lea.vmem [#allocation4], 16
    %761 = vst.msk [vmem:[%s760] sm:$0xff] %vm195, %v758
    %763 = vrot.lane.b32.xlu0 %v730, 32
    %v764 = vpop.permute.xlu0 %763
    %766 = vrot.lane.b32.xlu0 %v755, 64
    %v767 = vpop.permute.xlu0 %766
    %v769 = vsel %vm195, %v764, %v767
    %v771 = vsel %vm344, %v769, 0
    %773 = vmatprep.subr.mxu0 %v298
    %774 = vmatpush1.msra.mxu0 %v297
    %775 = vmatprep.subr.mxu0 %v300
    %776 = vmatpush1.msra.mxu0 %v299
    %777 = vmatprep.subr.mxu0 %v302
    %778 = vmatpush1.msra.mxu0 %v301
    %779 = vmatprep.subr.mxu0 %v304
    %780 = vmatpush1.msra.mxu0 %v303
    %781 = vmatprep.subr.mxu0 %v306
    %782 = vmatpush1.msra.mxu0 %v305
    %783 = vmatprep.subr.mxu0 %v308
    %784 = vmatpush1.msra.mxu0 %v307
    %785 = vmatprep.subr.mxu0 %v310
    %786 = vmatpush1.msra.mxu0 %v309
    %787 = vmatprep.subr.mxu0 %v312
    %788 = vmatpush1.msra.mxu0 %v311
    %789 = vmatprep.subr.mxu0 0.0
    %790 = vmatpush1.msra.mxu0 0.0
    %791 = vmatprep.subr.mxu0 0.0
    %792 = vmatpush1.msra.mxu0 0.0
    %793 = vmatprep.subr.mxu0 0.0
    %794 = vmatpush1.msra.mxu0 0.0
    %795 = vmatprep.subr.mxu0 0.0
    %796 = vmatpush1.msra.mxu0 0.0
    %797 = vmatprep.subr.mxu0 0.0
    %798 = vmatpush1.msra.mxu0 0.0
    %799 = vmatprep.subr.mxu0 0.0
    %800 = vmatpush1.msra.mxu0 0.0
    %801 = vmatprep.subr.mxu0 0.0
    %802 = vmatpush1.msra.mxu0 0.0
    %803 = vmatprep.subr.mxu0 0.0
    %804 = vmatpush1.msra.mxu0 0.0
    %805 = vmatprep.subr.mxu0 0.0
    %806 = vmatpush1.msra.mxu0 0.0
    %807 = vmatprep.subr.mxu0 0.0
    %808 = vmatpush1.msra.mxu0 0.0
    %809 = vmatprep.subr.mxu0 0.0
    %810 = vmatpush1.msra.mxu0 0.0
    %811 = vmatprep.subr.mxu0 0.0
    %812 = vmatpush1.msra.mxu0 0.0
    %813 = vmatprep.subr.mxu0 0.0
    %814 = vmatpush1.msra.mxu0 0.0
    %815 = vmatprep.subr.mxu0 0.0
    %816 = vmatpush1.msra.mxu0 0.0
    %817 = vmatprep.subr.mxu0 0.0
    %818 = vmatpush1.msra.mxu0 0.0
    %819 = vmatprep.subr.mxu0 0.0
    %820 = vmatpush1.msra.mxu0 0.0
    %821 = vmatprep.subr.mxu0 0.0
    %822 = vmatpush1.msra.mxu0 0.0
    %823 = vmatprep.subr.mxu0 0.0
    %824 = vmatpush1.msra.mxu0 0.0
    %825 = vmatprep.subr.mxu0 0.0
    %826 = vmatpush1.msra.mxu0 0.0
    %827 = vmatprep.subr.mxu0 0.0
    %828 = vmatpush1.msra.mxu0 0.0
    %829 = vmatprep.subr.mxu0 0.0
    %830 = vmatpush1.msra.mxu0 0.0
    %831 = vmatprep.subr.mxu0 0.0
    %832 = vmatpush1.msra.mxu0 0.0
    %833 = vmatprep.subr.mxu0 0.0
    %834 = vmatpush1.msra.mxu0 0.0
    %835 = vmatprep.subr.mxu0 0.0
    %836 = vmatpush1.msra.mxu0 0.0
    %837 = vmatprep.mubr.f32.mxu0 0.0
    %838 = vmatmul.mubr.f32.gmra.mrb[0].mxu0 %v771
    %v839 = vpop.f32.mrb[0].mxu0
    %v840 = vpop.f32.mrb[0].mxu0
    %v841 = vadd.f32 0.0, %v840
    %842 = vdwg.mxu0
    %v843 = vadd.f32 %v841, %v450
    %v844 = vxor.u32 %v843, 2147483648
    %v845 = vmul.f32 %v844, 1.442695
    %v846 = vpow.pop %v845
    %v847 = vadd.f32 %v846, 1.0
    %v848 = vrcp.pop %v847
    %v849 = vmul.f32 1.0, %v848
    %v850 = vtanh.pop %v843
    %v851 = vmul.f32 %v849, %v749
    %853 = vrot.lane.b32.xlu0 %v850, 64
    %v854 = vpop.permute.xlu0 %853
    %v856 = vmul.f32 %v849, %v854
    %858 = vrot.lane.b32.xlu0 %v856, 32
    %v859 = vpop.permute.xlu0 %858
    %v861 = vadd.f32 %v851, %v859
    %v862 = vtanh.pop %v861
    %864 = vrot.lane.b32.xlu0 %v862, 64
    %v865 = vpop.permute.xlu0 %864
    %v867 = vmul.f32 %v849, %v865
    %869 = vrot.lane.b32.xlu0 %v867, 32
    %v870 = vpop.permute.xlu0 %869
    %872 = vst.msk [vmem:[#allocation4 + $0x18] sm:$0xff] %vm195, %v870
    %v873 = vld [vmem:[#allocation4] sm:$0xff]
    %v874 = vld [vmem:[#allocation4 + $0x8] sm:$0xff]
    %v875 = vld [vmem:[#allocation4 + $0x10] sm:$0xff]
    %v876 = vld [vmem:[#allocation4 + $0x18] sm:$0xff]
    %v877 = vld [vmem:[%s7] sm:$0xff]
    %v878 = vld [vmem:[%s7 + $0x8] sm:$0xff]
    %v879 = vld [vmem:[%s7 + $0x10] sm:$0xff]
    %v880 = vld [vmem:[%s7 + $0x18] sm:$0xff]
    %v881 = vld [vmem:[%s8] sm:$0x1]
    %v883 = vlaneseq
    %v884 = vshrl.u32 %v883, 7
    %v885 = vsub.s32 0, %v884
    %v886 = vrot.slane %v881, %v885
    %v889 = vsel %vm195, %v873, 0
    %v892 = vsel %vm195, %v874, 0
    %v895 = vsel %vm195, %v875, 0
    %v898 = vsel %vm195, %v876, 0
    %900 = vmatprep.subr.mxu0 0.0
    %901 = vmatpush1.msra.mxu0 %v877
    %902 = vmatprep.subr.mxu0 0.0
    %903 = vmatpush1.msra.mxu0 %v878
    %904 = vmatprep.subr.mxu0 0.0
    %905 = vmatpush1.msra.mxu0 %v879
    %906 = vmatprep.subr.mxu0 0.0
    %907 = vmatpush1.msra.mxu0 %v880
    %908 = vmatprep.subr.mxu0 0.0
    %909 = vmatpush1.msra.mxu0 0.0
    %910 = vmatprep.subr.mxu0 0.0
    %911 = vmatpush1.msra.mxu0 0.0
    %912 = vmatprep.subr.mxu0 0.0
    %913 = vmatpush1.msra.mxu0 0.0
    %914 = vmatprep.subr.mxu0 0.0
    %915 = vmatpush1.msra.mxu0 0.0
    %916 = vmatprep.subr.mxu0 0.0
    %917 = vmatpush1.msra.mxu0 0.0
    %918 = vmatprep.subr.mxu0 0.0
    %919 = vmatpush1.msra.mxu0 0.0
    %920 = vmatprep.subr.mxu0 0.0
    %921 = vmatpush1.msra.mxu0 0.0
    %922 = vmatprep.subr.mxu0 0.0
    %923 = vmatpush1.msra.mxu0 0.0
    %924 = vmatprep.subr.mxu0 0.0
    %925 = vmatpush1.msra.mxu0 0.0
    %926 = vmatprep.subr.mxu0 0.0
    %927 = vmatpush1.msra.mxu0 0.0
    %928 = vmatprep.subr.mxu0 0.0
    %929 = vmatpush1.msra.mxu0 0.0
    %930 = vmatprep.subr.mxu0 0.0
    %931 = vmatpush1.msra.mxu0 0.0
    %932 = vmatprep.subr.mxu0 0.0
    %933 = vmatpush1.msra.mxu0 0.0
    %934 = vmatprep.subr.mxu0 0.0
    %935 = vmatpush1.msra.mxu0 0.0
    %936 = vmatprep.subr.mxu0 0.0
    %937 = vmatpush1.msra.mxu0 0.0
    %938 = vmatprep.subr.mxu0 0.0
    %939 = vmatpush1.msra.mxu0 0.0
    %940 = vmatprep.subr.mxu0 0.0
    %941 = vmatpush1.msra.mxu0 0.0
    %942 = vmatprep.subr.mxu0 0.0
    %943 = vmatpush1.msra.mxu0 0.0
    %944 = vmatprep.subr.mxu0 0.0
    %945 = vmatpush1.msra.mxu0 0.0
    %946 = vmatprep.subr.mxu0 0.0
    %947 = vmatpush1.msra.mxu0 0.0
    %948 = vmatprep.subr.mxu0 0.0
    %949 = vmatpush1.msra.mxu0 0.0
    %950 = vmatprep.subr.mxu0 0.0
    %951 = vmatpush1.msra.mxu0 0.0
    %952 = vmatprep.subr.mxu0 0.0
    %953 = vmatpush1.msra.mxu0 0.0
    %954 = vmatprep.subr.mxu0 0.0
    %955 = vmatpush1.msra.mxu0 0.0
    %956 = vmatprep.subr.mxu0 0.0
    %957 = vmatpush1.msra.mxu0 0.0
    %958 = vmatprep.subr.mxu0 0.0
    %959 = vmatpush1.msra.mxu0 0.0
    %960 = vmatprep.subr.mxu0 0.0
    %961 = vmatpush1.msra.mxu0 0.0
    %962 = vmatprep.subr.mxu0 0.0
    %963 = vmatpush1.msra.mxu0 0.0
    %964 = vmatprep.mubr.f32.mxu0 0.0
    %965 = vmatmul.mubr.f32.gmra.mrb[0].mxu0 %v889
    %v966 = vpop.f32.mrb[0].mxu0
    %v967 = vadd.f32 %v886, %v966
    %v968 = vpop.f32.mrb[0].mxu0
    %969 = vmatprep.mubr.f32.mxu0 0.0
    %970 = vmatmul.mubr.f32.gmra.mrb[0].mxu0 %v892
    %v971 = vpop.f32.mrb[0].mxu0
    %v972 = vadd.f32 %v886, %v971
    %v973 = vpop.f32.mrb[0].mxu0
    %974 = vmatprep.mubr.f32.mxu0 0.0
    %975 = vmatmul.mubr.f32.gmra.mrb[0].mxu0 %v895
    %v976 = vpop.f32.mrb[0].mxu0
    %v977 = vadd.f32 %v886, %v976
    %v978 = vpop.f32.mrb[0].mxu0
    %979 = vmatprep.mubr.f32.mxu0 0.0
    %980 = vmatmul.mubr.f32.gmra.mrb[0].mxu0 %v898
    %v981 = vpop.f32.mrb[0].mxu0
    %v982 = vadd.f32 %v886, %v981
    %v983 = vpop.f32.mrb[0].mxu0
    %984 = vdwg.mxu0
    %985 = vst [vmem:[%s9] sm:$0xff] %v967
    %986 = vst [vmem:[%s9 + $0x8] sm:$0xff] %v972
    %987 = vst [vmem:[%s9 + $0x10] sm:$0xff] %v977
    %988 = vst [vmem:[%s9 + $0x18] sm:$0xff] %v982
    // Predicated region
    $region46: #{resnet_decoder_forward.1} parent=1 // pred_check
      _
    $region47: #{resnet_decoder_forward.1} parent=1 // pred_check_branch
      %990 = sbr.rel (0) target = $region49
    $region48: #{resnet_decoder_forward.1} parent=1 // pred_region
      _
    $region49: #{resnet_decoder_forward.1} parent=1 // pred_fallthru
      _
    // Predicated region
    $region50: #{resnet_decoder_forward.1} parent=1 // pred_check
      _
    $region51: #{resnet_decoder_forward.1} parent=1 // pred_check_branch
      %992 = sbr.rel (0) target = $region53
    $region52: #{resnet_decoder_forward.1} parent=1 // pred_region
      _
    $region53: #{resnet_decoder_forward.1} parent=1 // pred_fallthru
      _
    %993 = vsyncpa [#allocation6], 1
    %994 = vsyncpa [#allocation7], 1

</llo_original>
